<compile_context>
chip_gen: v5e
topology: v5e:2x2
jax: 0.10.0
libtpu: 0.0.40
codegen_flags: <defaults>
</compile_context>

<pallas_src>
import functools

import jax
import jax.numpy as jnp
from jax import lax
from jax.experimental import pallas as pl
from jax.experimental.pallas import tpu as pltpu


# ----------------------------------------------------------------------------
# Sizing helpers
# ----------------------------------------------------------------------------
def _vmem_budget_bytes():
    """Usable VMEM budget, leaving headroom for compiler scratch."""
    cap = 64 << 20  # conservative default = v7x per-TensorCore VMEM
    try:
        info = pltpu.get_tpu_info()
        cap = int(getattr(info, "vmem_capacity_bytes", cap)) or cap
    except Exception:
        pass
    return (cap * 3) // 4  # ~48 MiB on v7x, ~96 MiB on v5e/v6e


def _sublane_multiple(dtype):
    """Sub-32-bit dtypes pack along sublanes: 8 (f32), 16 (bf16), 32 (int8)."""
    return 8 * max(1, 4 // jnp.dtype(dtype).itemsize)


def _pick_block_rows(n, row_bytes, cap_bytes, sub, want_split):
    """Samples per block: fits cap_bytes, sublane aligned, prefers dividing n."""
    fit_rows = max(1, cap_bytes // max(row_bytes, 1))
    top = min(n, fit_rows)
    if want_split:                        # v7x megacore: prefer >= 2 blocks
        top = min(top, max(1, n // 2))
    d = (top // sub) * sub
    while d >= sub:                       # largest aligned divisor -> no padding
        if n % d == 0:
            return d
        d -= sub
    if n <= fit_rows:                     # awkward n: one full block, no padding
        return n
    return max(sub, (min(n, fit_rows) // sub) * sub)   # padded multi-block


def _pick_block_cols(l, itemsize, sub, cap_bytes):
    """Lane-chunk width for the streaming path: multiple of 128 dividing l."""
    if l % 128 != 0:
        # TODO(synk): pad odd row lengths to a multiple of 128 so huge rows can
        # still be lane-chunked; until then they use one (possibly large) chunk.
        return l
    fit = (cap_bytes // (itemsize * sub) // 128) * 128
    if fit >= l:
        # Whole row fits: still split into >=2 lane chunks when possible so the
        # "parallel" chunk axis can shard across both v7x TensorCores.
        fit = ((l // 2) // 128) * 128
    tl = max(128, min(fit, l))
    while l % tl:
        tl -= 128
    return tl


# ----------------------------------------------------------------------------
# Kernels
# ----------------------------------------------------------------------------
def _mix_resident_kernel(index_ref, lam_ref, x_ref, o_ref, gbuf, sem,
                         *, bn, align, unroll):
    """Grid step i mixes rows [i*bn, (i+1)*bn) of the VMEM-resident x.

    index_ref : SMEM (N_pad,) int32   -- scalar-prefetched permutation
    lam_ref   : VMEM (bn, 1) f32      -- per-sample mix weight for this block
    x_ref     : VMEM (N_pad, L)       -- whole batch, resident (const index_map)
    o_ref     : VMEM (bn, L)          -- output block
    gbuf      : VMEM (bn, L) scratch  -- gathered (permuted) rows
    sem       : DMA semaphore shared by the local VMEM->VMEM row gathers
    """
    base = pl.program_id(0) * bn
    if align > 1:
        base = pl.multiple_of(base, align)

    def row_copy(r):
        idx = index_ref[base + r]
        return pltpu.make_async_copy(
            x_ref.at[pl.ds(idx, 1)], gbuf.at[pl.ds(r, 1)], sem)

    # Local gathers: no HBM traffic, so no cross-step double buffering needed.
    # All copies are identically sized, so per-row waits with the real
    # descriptors account exactly for the shared semaphore.
    def _issue(r, c):
        row_copy(r).start()
        return c
    lax.fori_loop(0, bn, _issue, 0, unroll=unroll)

    def _wait(r, c):
        row_copy(r).wait()
        return c
    lax.fori_loop(0, bn, _wait, 0, unroll=unroll)

    x = x_ref[pl.ds(base, bn), :].astype(jnp.float32)
    xp = gbuf[...].astype(jnp.float32)
    lam = lam_ref[...]                         # (bn, 1) f32, broadcasts on lanes
    # (1 - lam) * x + lam * xp  ==  x + lam * (xp - x)   (blend kept in f32)
    o_ref[...] = (x + lam * (xp - x)).astype(o_ref.dtype)


def _mix_stream_kernel(index_ref, lam_ref, x_ref, xs_hbm_ref, o_ref, gbuf, sem,
                       *, bn, tl, col_align, unroll):
    """Streaming path.  Grid = (lane_chunks [parallel], row_blocks [arbitrary]).

    The HBM gathers for row block i+1 are issued into gbuf slot (i+1)%2 before
    waiting on slot i%2, so they overlap the blend and the auto-pipelined x/out
    streams.  The prefetch only crosses the inner "arbitrary" axis, which keeps
    it megacore-safe when the outer "parallel" axis is sharded across cores.
    """
    j = pl.program_id(0)                  # lane chunk  (parallel)
    i = pl.program_id(1)                  # row block   (arbitrary, sequential)
    n_i = pl.num_programs(1)
    col = j * tl
    if col_align > 1:
        col = pl.multiple_of(col, col_align)

    def row_copy(blk, r, slot):
        idx = index_ref[blk * bn + r]
        return pltpu.make_async_copy(
            xs_hbm_ref.at[pl.ds(idx, 1), pl.ds(col, tl)],
            gbuf.at[slot, pl.ds(r, 1)],
            sem.at[slot])

    def issue_block(blk, slot):
        def _issue(r, c):
            row_copy(blk, r, slot).start()
            return c
        lax.fori_loop(0, bn, _issue, 0, unroll=unroll)

    @pl.when(i == 0)
    def _():                               # prologue: gathers for block 0
        issue_block(0, 0)

    @pl.when(i + 1 < n_i)
    def _():                               # prefetch gathers for block i+1
        issue_block(i + 1, (i + 1) % 2)

    slot = i % 2

    def _wait(r, c):                       # real, identically sized descriptors
        row_copy(i, r, slot).wait()
        return c
    lax.fori_loop(0, bn, _wait, 0, unroll=unroll)

    x = x_ref[...].astype(jnp.float32)
    xp = gbuf[slot].astype(jnp.float32)
    lam = lam_ref[...]                     # (bn, 1) f32
    o_ref[...] = (x + lam * (xp - x)).astype(o_ref.dtype)


# ----------------------------------------------------------------------------
# Wrapper
# ----------------------------------------------------------------------------
def aug_module_forward(xs, lam, y, index, *,
                       force_stream=False, block_cap_bytes=None,
                       resident_cap_bytes=None):
    """Pallas TPU equivalent of AugModule.forward -> (x_mix, y_a, y_b)."""
    N, C, H, W = xs.shape
    L = C * H * W
    dtype = xs.dtype
    itemsize = jnp.dtype(dtype).itemsize
    sub = _sublane_multiple(dtype)

    budget = _vmem_budget_bytes()
    if resident_cap_bytes is None:
        resident_cap_bytes = budget // 4
    x_bytes = N * L * itemsize

    index0 = jnp.asarray(index, jnp.int32).reshape(N)
    lam2 = jnp.broadcast_to(jnp.asarray(lam, jnp.float32).reshape(-1),
                            (N,)).reshape(N, 1)
    x2 = xs.reshape(N, L)

    resident = (not force_stream) and (x_bytes <= resident_cap_bytes)

    if resident:
        cap = block_cap_bytes or max((budget - 2 * x_bytes) // 4, 1 << 20)
        bn = _pick_block_rows(N, L * itemsize, cap, sub, want_split=True)
        tl = L
    else:
        cap = block_cap_bytes or budget // 8
        tl = _pick_block_cols(L, itemsize, sub, cap)
        bn = _pick_block_rows(N, tl * itemsize, cap, sub, want_split=False)

    n_blocks = -(-N // bn)
    n_pad = n_blocks * bn
    index_p, lam_p, x2p = index0, lam2, x2
    if n_pad != N:
        # Rare: no sublane-aligned divisor of N fits the VMEM cap.
        pad = n_pad - N
        x2p = jnp.pad(x2, ((0, pad), (0, 0)))
        lam_p = jnp.pad(lam2, ((0, pad), (0, 0)))
        index_p = jnp.pad(index0, ((0, pad),))   # 0 -> valid gather row

    unroll = int(min(bn, 8))
    align = bn if bn % sub == 0 else 1
    col_align = tl if tl % 128 == 0 else 1

    common = dict(
        out_shape=jax.ShapeDtypeStruct((n_pad, L), dtype),
        compiler_params=pltpu.CompilerParams(
            dimension_semantics=(("parallel",) if resident
                                 else ("parallel", "arbitrary")),
            vmem_limit_bytes=int(budget)),
        cost_estimate=pl.CostEstimate(
            flops=int(3 * n_pad * L), transcendentals=0,
            bytes_accessed=int((2 if resident else 3) * n_pad * L * itemsize)),
    )

    if resident:
        kernel = functools.partial(_mix_resident_kernel, bn=bn, align=align,
                                   unroll=unroll)
        grid_spec = pltpu.PrefetchScalarGridSpec(
            num_scalar_prefetch=1,                       # `index` lives in SMEM
            grid=(n_blocks,),
            in_specs=[
                pl.BlockSpec((bn, 1), lambda i, idx: (i, 0)),      # lam
                pl.BlockSpec((n_pad, L), lambda i, idx: (0, 0)),   # resident x
            ],
            out_specs=pl.BlockSpec((bn, L), lambda i, idx: (i, 0)),
            scratch_shapes=[
                pltpu.VMEM((bn, L), dtype),     # gathered (permuted) rows
                pltpu.SemaphoreType.DMA,        # shared local-gather semaphore
            ],
        )
        x_mix = pl.pallas_call(kernel, grid_spec=grid_spec, **common)(
            index_p, lam_p, x2p)
    else:
        n_col = L // tl
        kernel = functools.partial(_mix_stream_kernel, bn=bn, tl=tl,
                                   col_align=col_align, unroll=unroll)
        grid_spec = pltpu.PrefetchScalarGridSpec(
            num_scalar_prefetch=1,
            grid=(n_col, n_blocks),
            in_specs=[
                pl.BlockSpec((bn, 1), lambda j, i, idx: (i, 0)),   # lam
                pl.BlockSpec((bn, tl), lambda j, i, idx: (i, j)),  # x stream
                pl.BlockSpec(memory_space=pl.ANY),                 # gather src
            ],
            out_specs=pl.BlockSpec((bn, tl), lambda j, i, idx: (i, j)),
            scratch_shapes=[
                pltpu.VMEM((2, bn, tl), dtype),    # double-buffered gather rows
                pltpu.SemaphoreType.DMA((2,)),     # per-slot gather semaphores
            ],
        )
        x_mix = pl.pallas_call(kernel, grid_spec=grid_spec, **common)(
            index_p, lam_p, x2p, x2p)

    if n_pad != N:
        x_mix = x_mix[:N]
    x_mix = x_mix.reshape(N, C, H, W)

    # Label bookkeeping (pure indexing, no compute worth a kernel).
    y_a = y
    y_b = jnp.take(y, index0, axis=0)
    return x_mix, y_a, y_b


# ----------------------------------------------------------------------------
# Self-test
# ----------------------------------------------------------------------------
if __name__ == "__main__":
    key = jax.random.PRNGKey(0)
    ks = jax.random.split(key, 12)

    def reference(xs, lam, y, index):
        lam_b = lam.reshape(-1, 1, 1, 1).astype(jnp.float32)
        x = xs.astype(jnp.float32)
        x_mix = ((1.0 - lam_b) * x + lam_b * x[index]).astype(xs.dtype)
        return x_mix, y, y[index]

    def check(name, out, ref, atol=1e-5):
        xm, ya, yb = out
        xr, yra, yrb = ref
        assert xm.shape == xr.shape and xm.dtype == xr.dtype, name
        assert jnp.allclose(xm.astype(jnp.float32), xr.astype(jnp.float32),
                            atol=atol), f"x_mix mismatch ({name})"
        assert jnp.array_equal(ya, yra), f"y_a mismatch ({name})"
        assert jnp.array_equal(yb, yrb), f"y_b mismatch ({name})"

    # --- Config A: resident path, >=2 parallel row blocks -------------------
    N, C, H, W = 16, 4, 16, 16
    xs = jax.random.normal(ks[0], (N, C, H, W), dtype=jnp.float32)
    lam = jax.random.uniform(ks[1], (N,), dtype=jnp.float32)
    y = jax.random.randint(ks[2], (N,), 0, 100, dtype=jnp.int32)
    idx = jax.random.permutation(ks[3], N).astype(jnp.int32)
    out = aug_module_forward(xs, lam, y, idx)
    jax.block_until_ready(out)
    check("resident/multi-block", out, reference(xs, lam, y, idx))

    # --- Config B: resident path, awkward batch -> one full block, no pad ---
    N2, C2, H2, W2 = 6, 2, 8, 8
    xs2 = jax.random.normal(ks[4], (N2, C2, H2, W2), dtype=jnp.float32)
    lam2 = jax.random.uniform(ks[5], (N2,), dtype=jnp.float32)
    y2 = jax.random.randint(ks[6], (N2,), 0, 100, dtype=jnp.int32)
    idx2 = jax.random.permutation(ks[7], N2).astype(jnp.int32)
    out2 = aug_module_forward(xs2, lam2, y2, idx2)
    jax.block_until_ready(out2)
    check("resident/single-block", out2, reference(xs2, lam2, y2, idx2))

    # --- Config C: streaming path (double-buffered HBM gather, lane chunks) -
    N3, C3, H3, W3 = 16, 3, 16, 16
    xs3 = jax.random.normal(ks[8], (N3, C3, H3, W3), dtype=jnp.float32)
    lam3 = jax.random.uniform(ks[9], (N3,), dtype=jnp.float32)
    y3 = jax.random.randint(ks[10], (N3,), 0, 100, dtype=jnp.int32)
    idx3 = jax.random.permutation(ks[11], N3).astype(jnp.int32)
    out3 = aug_module_forward(xs3, lam3, y3, idx3,
                              force_stream=True, block_cap_bytes=16 * 1024)
    jax.block_until_ready(out3)
    check("streaming", out3, reference(xs3, lam3, y3, idx3))

    print("KERNEL_OK")
</pallas_src>

<mosaic_0001>
module attributes {stable_mosaic.version = 11 : i64} {
  func.func @_mix_resident_kernel(%arg0: i32, %arg1: memref<16xi32, #tpu.memory_space<smem>>, %arg2: memref<8x1xf32, #tpu.memory_space<vmem>>, %arg3: memref<16x1024xf32, #tpu.memory_space<vmem>>, %arg4: memref<8x1024xf32, #tpu.memory_space<vmem>>, %arg5: memref<8x1024xf32, #tpu.memory_space<vmem>>, %arg6: memref<!tpu.dma_semaphore, #tpu.memory_space<semaphore_mem>>) attributes {dimension_semantics = [#tpu.dimension_semantics<parallel>], iteration_bounds = array<i64: 2>, scalar_prefetch = 1 : i64, scratch_operands = 2 : i64, tpu.core_type = #tpu.core_type<tc>, window_params = [{transform_indices = @transform_0, window_bounds = array<i64: 8, 1>}, {pipeline_mode = #tpu.pipeline_mode<synchronous>, transform_indices = @transform_1, window_bounds = array<i64: 16, 1024>}, {transform_indices = @transform_2, window_bounds = array<i64: 8, 1024>}]} {
    %c8_i32 = arith.constant 8 : i32
    %0 = arith.muli %arg0, %c8_i32 : i32
    %1 = tpu.assume_multiple %0, 8 : i32
    %c0_i32 = arith.constant 0 : i32
    %2 = arith.addi %1, %c0_i32 : i32
    %3 = arith.index_cast %2 : i32 to index
    %4 = memref.load %arg1[%3] : memref<16xi32, #tpu.memory_space<smem>>
    %c0_i32_0 = arith.constant 0 : i32
    %5 = tpu.memref_slice %arg3[%4, %c0_i32_0] : memref<16x1024xf32, #tpu.memory_space<vmem>> -> memref<1x1024xf32, #tpu.memory_space<vmem>>
    %c0_i32_1 = arith.constant 0 : i32
    %6 = tpu.memref_slice %arg5[%c0_i32, %c0_i32_1] : memref<8x1024xf32, #tpu.memory_space<vmem>> -> memref<1x1024xf32, #tpu.memory_space<vmem>>
    tpu.enqueue_dma source(%5 : memref<1x1024xf32, #tpu.memory_space<vmem>>) target(%6 : memref<1x1024xf32, #tpu.memory_space<vmem>>) target_semaphore(%arg6 : memref<!tpu.dma_semaphore, #tpu.memory_space<semaphore_mem>>)
    %c1_i32 = arith.constant 1 : i32
    %7 = arith.addi %1, %c1_i32 : i32
    %8 = arith.index_cast %7 : i32 to index
    %9 = memref.load %arg1[%8] : memref<16xi32, #tpu.memory_space<smem>>
    %c0_i32_2 = arith.constant 0 : i32
    %10 = tpu.memref_slice %arg3[%9, %c0_i32_2] : memref<16x1024xf32, #tpu.memory_space<vmem>> -> memref<1x1024xf32, #tpu.memory_space<vmem>>
    %c0_i32_3 = arith.constant 0 : i32
    %11 = tpu.memref_slice %arg5[%c1_i32, %c0_i32_3] : memref<8x1024xf32, #tpu.memory_space<vmem>> -> memref<1x1024xf32, #tpu.memory_space<vmem>>
    tpu.enqueue_dma source(%10 : memref<1x1024xf32, #tpu.memory_space<vmem>>) target(%11 : memref<1x1024xf32, #tpu.memory_space<vmem>>) target_semaphore(%arg6 : memref<!tpu.dma_semaphore, #tpu.memory_space<semaphore_mem>>)
    %c2_i32 = arith.constant 2 : i32
    %12 = arith.addi %1, %c2_i32 : i32
    %13 = arith.index_cast %12 : i32 to index
    %14 = memref.load %arg1[%13] : memref<16xi32, #tpu.memory_space<smem>>
    %c0_i32_4 = arith.constant 0 : i32
    %15 = tpu.memref_slice %arg3[%14, %c0_i32_4] : memref<16x1024xf32, #tpu.memory_space<vmem>> -> memref<1x1024xf32, #tpu.memory_space<vmem>>
    %c0_i32_5 = arith.constant 0 : i32
    %16 = tpu.memref_slice %arg5[%c2_i32, %c0_i32_5] : memref<8x1024xf32, #tpu.memory_space<vmem>> -> memref<1x1024xf32, #tpu.memory_space<vmem>>
    tpu.enqueue_dma source(%15 : memref<1x1024xf32, #tpu.memory_space<vmem>>) target(%16 : memref<1x1024xf32, #tpu.memory_space<vmem>>) target_semaphore(%arg6 : memref<!tpu.dma_semaphore, #tpu.memory_space<semaphore_mem>>)
    %c3_i32 = arith.constant 3 : i32
    %17 = arith.addi %1, %c3_i32 : i32
    %18 = arith.index_cast %17 : i32 to index
    %19 = memref.load %arg1[%18] : memref<16xi32, #tpu.memory_space<smem>>
    %c0_i32_6 = arith.constant 0 : i32
    %20 = tpu.memref_slice %arg3[%19, %c0_i32_6] : memref<16x1024xf32, #tpu.memory_space<vmem>> -> memref<1x1024xf32, #tpu.memory_space<vmem>>
    %c0_i32_7 = arith.constant 0 : i32
    %21 = tpu.memref_slice %arg5[%c3_i32, %c0_i32_7] : memref<8x1024xf32, #tpu.memory_space<vmem>> -> memref<1x1024xf32, #tpu.memory_space<vmem>>
    tpu.enqueue_dma source(%20 : memref<1x1024xf32, #tpu.memory_space<vmem>>) target(%21 : memref<1x1024xf32, #tpu.memory_space<vmem>>) target_semaphore(%arg6 : memref<!tpu.dma_semaphore, #tpu.memory_space<semaphore_mem>>)
    %c4_i32 = arith.constant 4 : i32
    %22 = arith.addi %1, %c4_i32 : i32
    %23 = arith.index_cast %22 : i32 to index
    %24 = memref.load %arg1[%23] : memref<16xi32, #tpu.memory_space<smem>>
    %c0_i32_8 = arith.constant 0 : i32
    %25 = tpu.memref_slice %arg3[%24, %c0_i32_8] : memref<16x1024xf32, #tpu.memory_space<vmem>> -> memref<1x1024xf32, #tpu.memory_space<vmem>>
    %c0_i32_9 = arith.constant 0 : i32
    %26 = tpu.memref_slice %arg5[%c4_i32, %c0_i32_9] : memref<8x1024xf32, #tpu.memory_space<vmem>> -> memref<1x1024xf32, #tpu.memory_space<vmem>>
    tpu.enqueue_dma source(%25 : memref<1x1024xf32, #tpu.memory_space<vmem>>) target(%26 : memref<1x1024xf32, #tpu.memory_space<vmem>>) target_semaphore(%arg6 : memref<!tpu.dma_semaphore, #tpu.memory_space<semaphore_mem>>)
    %c5_i32 = arith.constant 5 : i32
    %27 = arith.addi %1, %c5_i32 : i32
    %28 = arith.index_cast %27 : i32 to index
    %29 = memref.load %arg1[%28] : memref<16xi32, #tpu.memory_space<smem>>
    %c0_i32_10 = arith.constant 0 : i32
    %30 = tpu.memref_slice %arg3[%29, %c0_i32_10] : memref<16x1024xf32, #tpu.memory_space<vmem>> -> memref<1x1024xf32, #tpu.memory_space<vmem>>
    %c0_i32_11 = arith.constant 0 : i32
    %31 = tpu.memref_slice %arg5[%c5_i32, %c0_i32_11] : memref<8x1024xf32, #tpu.memory_space<vmem>> -> memref<1x1024xf32, #tpu.memory_space<vmem>>
    tpu.enqueue_dma source(%30 : memref<1x1024xf32, #tpu.memory_space<vmem>>) target(%31 : memref<1x1024xf32, #tpu.memory_space<vmem>>) target_semaphore(%arg6 : memref<!tpu.dma_semaphore, #tpu.memory_space<semaphore_mem>>)
    %c6_i32 = arith.constant 6 : i32
    %32 = arith.addi %1, %c6_i32 : i32
    %33 = arith.index_cast %32 : i32 to index
    %34 = memref.load %arg1[%33] : memref<16xi32, #tpu.memory_space<smem>>
    %c0_i32_12 = arith.constant 0 : i32
    %35 = tpu.memref_slice %arg3[%34, %c0_i32_12] : memref<16x1024xf32, #tpu.memory_space<vmem>> -> memref<1x1024xf32, #tpu.memory_space<vmem>>
    %c0_i32_13 = arith.constant 0 : i32
    %36 = tpu.memref_slice %arg5[%c6_i32, %c0_i32_13] : memref<8x1024xf32, #tpu.memory_space<vmem>> -> memref<1x1024xf32, #tpu.memory_space<vmem>>
    tpu.enqueue_dma source(%35 : memref<1x1024xf32, #tpu.memory_space<vmem>>) target(%36 : memref<1x1024xf32, #tpu.memory_space<vmem>>) target_semaphore(%arg6 : memref<!tpu.dma_semaphore, #tpu.memory_space<semaphore_mem>>)
    %c7_i32 = arith.constant 7 : i32
    %37 = arith.addi %1, %c7_i32 : i32
    %38 = arith.index_cast %37 : i32 to index
    %39 = memref.load %arg1[%38] : memref<16xi32, #tpu.memory_space<smem>>
    %c0_i32_14 = arith.constant 0 : i32
    %40 = tpu.memref_slice %arg3[%39, %c0_i32_14] : memref<16x1024xf32, #tpu.memory_space<vmem>> -> memref<1x1024xf32, #tpu.memory_space<vmem>>
    %c0_i32_15 = arith.constant 0 : i32
    %41 = tpu.memref_slice %arg5[%c7_i32, %c0_i32_15] : memref<8x1024xf32, #tpu.memory_space<vmem>> -> memref<1x1024xf32, #tpu.memory_space<vmem>>
    tpu.enqueue_dma source(%40 : memref<1x1024xf32, #tpu.memory_space<vmem>>) target(%41 : memref<1x1024xf32, #tpu.memory_space<vmem>>) target_semaphore(%arg6 : memref<!tpu.dma_semaphore, #tpu.memory_space<semaphore_mem>>)
    %c8_i32_16 = arith.constant 8 : i32
    %c0_i32_17 = arith.constant 0 : i32
    %42 = arith.addi %1, %c0_i32_17 : i32
    %43 = arith.index_cast %42 : i32 to index
    %44 = memref.load %arg1[%43] : memref<16xi32, #tpu.memory_space<smem>>
    %c0_i32_18 = arith.constant 0 : i32
    %45 = tpu.memref_slice %arg3[%44, %c0_i32_18] : memref<16x1024xf32, #tpu.memory_space<vmem>> -> memref<1x1024xf32, #tpu.memory_space<vmem>>
    %c0_i32_19 = arith.constant 0 : i32
    %46 = tpu.memref_slice %arg5[%c0_i32_17, %c0_i32_19] : memref<8x1024xf32, #tpu.memory_space<vmem>> -> memref<1x1024xf32, #tpu.memory_space<vmem>>
    tpu.wait_dma2 semaphore(%arg6 : memref<!tpu.dma_semaphore, #tpu.memory_space<semaphore_mem>>) src(%45 : memref<1x1024xf32, #tpu.memory_space<vmem>>) dst(%46 : memref<1x1024xf32, #tpu.memory_space<vmem>>)
    %c1_i32_20 = arith.constant 1 : i32
    %47 = arith.addi %1, %c1_i32_20 : i32
    %48 = arith.index_cast %47 : i32 to index
    %49 = memref.load %arg1[%48] : memref<16xi32, #tpu.memory_space<smem>>
    %c0_i32_21 = arith.constant 0 : i32
    %50 = tpu.memref_slice %arg3[%49, %c0_i32_21] : memref<16x1024xf32, #tpu.memory_space<vmem>> -> memref<1x1024xf32, #tpu.memory_space<vmem>>
    %c0_i32_22 = arith.constant 0 : i32
    %51 = tpu.memref_slice %arg5[%c1_i32_20, %c0_i32_22] : memref<8x1024xf32, #tpu.memory_space<vmem>> -> memref<1x1024xf32, #tpu.memory_space<vmem>>
    tpu.wait_dma2 semaphore(%arg6 : memref<!tpu.dma_semaphore, #tpu.memory_space<semaphore_mem>>) src(%50 : memref<1x1024xf32, #tpu.memory_space<vmem>>) dst(%51 : memref<1x1024xf32, #tpu.memory_space<vmem>>)
    %c2_i32_23 = arith.constant 2 : i32
    %52 = arith.addi %1, %c2_i32_23 : i32
    %53 = arith.index_cast %52 : i32 to index
    %54 = memref.load %arg1[%53] : memref<16xi32, #tpu.memory_space<smem>>
    %c0_i32_24 = arith.constant 0 : i32
    %55 = tpu.memref_slice %arg3[%54, %c0_i32_24] : memref<16x1024xf32, #tpu.memory_space<vmem>> -> memref<1x1024xf32, #tpu.memory_space<vmem>>
    %c0_i32_25 = arith.constant 0 : i32
    %56 = tpu.memref_slice %arg5[%c2_i32_23, %c0_i32_25] : memref<8x1024xf32, #tpu.memory_space<vmem>> -> memref<1x1024xf32, #tpu.memory_space<vmem>>
    tpu.wait_dma2 semaphore(%arg6 : memref<!tpu.dma_semaphore, #tpu.memory_space<semaphore_mem>>) src(%55 : memref<1x1024xf32, #tpu.memory_space<vmem>>) dst(%56 : memref<1x1024xf32, #tpu.memory_space<vmem>>)
    %c3_i32_26 = arith.constant 3 : i32
    %57 = arith.addi %1, %c3_i32_26 : i32
    %58 = arith.index_cast %57 : i32 to index
    %59 = memref.load %arg1[%58] : memref<16xi32, #tpu.memory_space<smem>>
    %c0_i32_27 = arith.constant 0 : i32
    %60 = tpu.memref_slice %arg3[%59, %c0_i32_27] : memref<16x1024xf32, #tpu.memory_space<vmem>> -> memref<1x1024xf32, #tpu.memory_space<vmem>>
    %c0_i32_28 = arith.constant 0 : i32
    %61 = tpu.memref_slice %arg5[%c3_i32_26, %c0_i32_28] : memref<8x1024xf32, #tpu.memory_space<vmem>> -> memref<1x1024xf32, #tpu.memory_space<vmem>>
    tpu.wait_dma2 semaphore(%arg6 : memref<!tpu.dma_semaphore, #tpu.memory_space<semaphore_mem>>) src(%60 : memref<1x1024xf32, #tpu.memory_space<vmem>>) dst(%61 : memref<1x1024xf32, #tpu.memory_space<vmem>>)
    %c4_i32_29 = arith.constant 4 : i32
    %62 = arith.addi %1, %c4_i32_29 : i32
    %63 = arith.index_cast %62 : i32 to index
    %64 = memref.load %arg1[%63] : memref<16xi32, #tpu.memory_space<smem>>
    %c0_i32_30 = arith.constant 0 : i32
    %65 = tpu.memref_slice %arg3[%64, %c0_i32_30] : memref<16x1024xf32, #tpu.memory_space<vmem>> -> memref<1x1024xf32, #tpu.memory_space<vmem>>
    %c0_i32_31 = arith.constant 0 : i32
    %66 = tpu.memref_slice %arg5[%c4_i32_29, %c0_i32_31] : memref<8x1024xf32, #tpu.memory_space<vmem>> -> memref<1x1024xf32, #tpu.memory_space<vmem>>
    tpu.wait_dma2 semaphore(%arg6 : memref<!tpu.dma_semaphore, #tpu.memory_space<semaphore_mem>>) src(%65 : memref<1x1024xf32, #tpu.memory_space<vmem>>) dst(%66 : memref<1x1024xf32, #tpu.memory_space<vmem>>)
    %c5_i32_32 = arith.constant 5 : i32
    %67 = arith.addi %1, %c5_i32_32 : i32
    %68 = arith.index_cast %67 : i32 to index
    %69 = memref.load %arg1[%68] : memref<16xi32, #tpu.memory_space<smem>>
    %c0_i32_33 = arith.constant 0 : i32
    %70 = tpu.memref_slice %arg3[%69, %c0_i32_33] : memref<16x1024xf32, #tpu.memory_space<vmem>> -> memref<1x1024xf32, #tpu.memory_space<vmem>>
    %c0_i32_34 = arith.constant 0 : i32
    %71 = tpu.memref_slice %arg5[%c5_i32_32, %c0_i32_34] : memref<8x1024xf32, #tpu.memory_space<vmem>> -> memref<1x1024xf32, #tpu.memory_space<vmem>>
    tpu.wait_dma2 semaphore(%arg6 : memref<!tpu.dma_semaphore, #tpu.memory_space<semaphore_mem>>) src(%70 : memref<1x1024xf32, #tpu.memory_space<vmem>>) dst(%71 : memref<1x1024xf32, #tpu.memory_space<vmem>>)
    %c6_i32_35 = arith.constant 6 : i32
    %72 = arith.addi %1, %c6_i32_35 : i32
    %73 = arith.index_cast %72 : i32 to index
    %74 = memref.load %arg1[%73] : memref<16xi32, #tpu.memory_space<smem>>
    %c0_i32_36 = arith.constant 0 : i32
    %75 = tpu.memref_slice %arg3[%74, %c0_i32_36] : memref<16x1024xf32, #tpu.memory_space<vmem>> -> memref<1x1024xf32, #tpu.memory_space<vmem>>
    %c0_i32_37 = arith.constant 0 : i32
    %76 = tpu.memref_slice %arg5[%c6_i32_35, %c0_i32_37] : memref<8x1024xf32, #tpu.memory_space<vmem>> -> memref<1x1024xf32, #tpu.memory_space<vmem>>
    tpu.wait_dma2 semaphore(%arg6 : memref<!tpu.dma_semaphore, #tpu.memory_space<semaphore_mem>>) src(%75 : memref<1x1024xf32, #tpu.memory_space<vmem>>) dst(%76 : memref<1x1024xf32, #tpu.memory_space<vmem>>)
    %c7_i32_38 = arith.constant 7 : i32
    %77 = arith.addi %1, %c7_i32_38 : i32
    %78 = arith.index_cast %77 : i32 to index
    %79 = memref.load %arg1[%78] : memref<16xi32, #tpu.memory_space<smem>>
    %c0_i32_39 = arith.constant 0 : i32
    %80 = tpu.memref_slice %arg3[%79, %c0_i32_39] : memref<16x1024xf32, #tpu.memory_space<vmem>> -> memref<1x1024xf32, #tpu.memory_space<vmem>>
    %c0_i32_40 = arith.constant 0 : i32
    %81 = tpu.memref_slice %arg5[%c7_i32_38, %c0_i32_40] : memref<8x1024xf32, #tpu.memory_space<vmem>> -> memref<1x1024xf32, #tpu.memory_space<vmem>>
    tpu.wait_dma2 semaphore(%arg6 : memref<!tpu.dma_semaphore, #tpu.memory_space<semaphore_mem>>) src(%80 : memref<1x1024xf32, #tpu.memory_space<vmem>>) dst(%81 : memref<1x1024xf32, #tpu.memory_space<vmem>>)
    %c8_i32_41 = arith.constant 8 : i32
    %82 = arith.index_cast %1 : i32 to index
    %c0 = arith.constant 0 : index
    %83 = vector.load %arg3[%82, %c0] : memref<16x1024xf32, #tpu.memory_space<vmem>>, vector<8x1024xf32>
    %c0_42 = arith.constant 0 : index
    %c0_43 = arith.constant 0 : index
    %84 = vector.load %arg5[%c0_42, %c0_43] : memref<8x1024xf32, #tpu.memory_space<vmem>>, vector<8x1024xf32>
    %c0_44 = arith.constant 0 : index
    %c0_45 = arith.constant 0 : index
    %85 = vector.load %arg2[%c0_44, %c0_45] : memref<8x1xf32, #tpu.memory_space<vmem>>, vector<8x1xf32>
    %86 = arith.subf %84, %83 : vector<8x1024xf32>
    %87 = vector.broadcast %85 : vector<8x1xf32> to vector<8x1024xf32>
    %88 = arith.mulf %87, %86 : vector<8x1024xf32>
    %89 = arith.addf %83, %88 : vector<8x1024xf32>
    %c0_46 = arith.constant 0 : index
    %c0_47 = arith.constant 0 : index
    %90 = vector.load %arg4[%c0_46, %c0_47] : memref<8x1024xf32, #tpu.memory_space<vmem>>, vector<8x1024xf32>
    tpu.vector_store %arg4[%c0_46, %c0_47], %89 {strides = array<i32>} : memref<8x1024xf32, #tpu.memory_space<vmem>>, vector<8x1024xf32>,
    return
  }
  func.func @transform_0(%arg0: i32, %arg1: memref<16xi32, #tpu.memory_space<smem>>) -> (i32, i32) {
    %c0_i32 = arith.constant 0 : i32
    %c0_i32_0 = arith.constant 0 : i32
    return %arg0, %c0_i32 : i32, i32
  }
  func.func @transform_1(%arg0: i32, %arg1: memref<16xi32, #tpu.memory_space<smem>>) -> (i32, i32) {
    %c0_i32 = arith.constant 0 : i32
    %c0_i32_0 = arith.constant 0 : i32
    %c0_i32_1 = arith.constant 0 : i32
    return %c0_i32, %c0_i32_0 : i32, i32
  }
  func.func @transform_2(%arg0: i32, %arg1: memref<16xi32, #tpu.memory_space<smem>>) -> (i32, i32) {
    %c0_i32 = arith.constant 0 : i32
    %c0_i32_0 = arith.constant 0 : i32
    return %arg0, %c0_i32 : i32, i32
  }
}

</mosaic_0001>

<llo_original>
// kernel: tpu_custom_call.1
$region0: #{tpu_custom_call.1}
  #allocation0 [shape = 'u32[]', space=smem, size = 0x4, offset = 0x4, fixed_abs, tag = 'smem constant byte address 0x4 - core index']
  #allocation1 [shape = 'u32[72,128]{1,0:T(1,128)}', space=vmem, size = 0x9000, scoped, tag = 'internal scratch']
  #allocation2 [shape = 'f32[8,1024]{1,0:T(8,128)}', space=vmem, size = 0x8000, scoped, tag = 'scratch operand']
  #allocation3 [shape = 's32[1]{0}', space=sflag, size = 0x4, scoped, tag = 'scratch operand']
  #allocation4 [shape = 's32[1]{0}', space=sflag, size = 0x4, scoped, tag = 'scoped memory for tpu_custom_call.1']
  #allocation5 [shape = 'u8[512]{0}', space=smem, size = 0x200, scoped, tag = 'prefetched SMEM operand 0']
  #allocation10 [shape = 's32[]', space=sflag, size = 0x4, offset = 0, fixed_abs, tag = 'sflag constant byte address 0x0 - dummy sync flag']
  #allocation11 [shape = 's32[]', space=sflag, size = 0x4, offset = 0, fixed_abs, tag = 'sflag constant byte address 0x0 - dummy sync flag']
  #allocation12 [shape = 's32[]', space=sflag, size = 0x4, offset = 0, fixed_abs, tag = 'sflag constant byte address 0x0 - dummy sync flag']
  #allocation13 [shape = 's32[]', space=sflag, size = 0x4, offset = 0, fixed_abs, tag = 'sflag constant byte address 0x0 - dummy sync flag']
  #allocation14 [shape = 's32[]', space=sflag, size = 0x4, offset = 0, fixed_abs, tag = 'sflag constant byte address 0x0 - dummy sync flag']
  #allocation15 [shape = 's32[]', space=sflag, size = 0x4, offset = 0, fixed_abs, tag = 'sflag constant byte address 0x0 - dummy sync flag']
  #allocation16 [shape = 's32[]', space=sflag, size = 0x4, offset = 0, fixed_abs, tag = 'sflag constant byte address 0x0 - dummy sync flag']
  #allocation17 [shape = 's32[]', space=sflag, size = 0x4, offset = 0, fixed_abs, tag = 'sflag constant byte address 0x0 - dummy sync flag']
  %s0 = inlined_call_operand.vmem [shape: s32[16], index: 0, kind: input, shape index: {}]
  %s1 = inlined_call_operand.vmem [shape: f32[16,1], index: 1, kind: input, shape index: {}]
  %s2 = inlined_call_operand.hbm [shape: f32[16,1024], index: 2, kind: input, shape index: {}]
  %s3 = inlined_call_operand.hbm [shape: f32[16,1024], index: 3, kind: output, shape index: {}]
  %s4 = sld [smem:[#allocation0]]
  $region341: #{tpu_custom_call.1} parent=0
    _
  %s6 = ssub.s32 1, %s4
  %s7 = scalar_select 0, %s6, %s4
  %s9 = sshll.u32 %s0, 4
  %s10 = int_to_ptr.vmem [resolvable:$true] %s9
  %12 = dma.vmem_to_smem %s10, 16, [#allocation5], [#allocation4]
  %14 = dma.done [#allocation4], 16
  %15 = sfence
  $region1: #{tpu_custom_call.1} parent=0
    #allocation6 [shape = 'u8[65536]{0}', space=vmem, size = 0x10000, scoped, tag = 'input window, operand 2, single buffered']
    #allocation7 [shape = 's32[2]{0}', space=sflag, size = 0x8, scoped, tag = 'scoped memory for tpu_custom_call.1']
    #allocation8 [shape = 's32[2]{0}', space=sflag, size = 0x8, scoped, tag = 'scoped memory for tpu_custom_call.1']
    #allocation9 [shape = 'u8[65536]{0}', space=vmem, size = 0x10000, scoped, tag = 'output window, operand 0']
    %16 = vsyncpa [#allocation7], 0
    %17 = vsyncpa [#allocation8], 0
    %s18 = scalar_lea.sflag [#allocation8], 1
    %19 = vsyncpa %s18, 0
    loop: start=0, step=1, limit=4
    $region2: #{tpu_custom_call.1} parent=1 // loop_pre_header
      _
    $region3: #{tpu_custom_call.1} parent=1 // loop_header
      %s21 = sphi 0, %s25
      %p22 = scmp.ge.s32.totalorder %s21, 4
      %s31 = sphi 0, %s33
      %s34 = sphi 0, %s31
      %s35 = sphi 0, %s34
      %s51 = sphi 0, %s35
      %s55 = sphi 0, %s55
      %s57 = sphi 0, %s55
      %s58 = sphi 0, %s57
      %s72 = sphi 0, %s58
      %s78 = sphi 0, %s80
      %s81 = sphi 0, %s78
      %s82 = sphi 0, %s81
      %s98 = sphi 0, %s82
    $region4: #{tpu_custom_call.1} parent=1 // loop_header_branch
      %24 = sbr.rel (%p22) target = $region8
    $region5: #{tpu_custom_call.1} parent=1 // loop_body
      %s26 = ssub.s32 %s21, 1
      %s27 = ssub.s32 %s21, 2
      %s28 = sadd.s32 %s21, 1
      %s29 = ssub.s32 %s21, %s28
      %p30 = scmp.eq.s32.totalorder %s29, 0
      %s32 = sadd.s32 %s31, 1
      %s33 = scalar_select %p30, %s31, %s32
      %p36 = pneg %p30
      %p37 = scmp.eq.s32.totalorder %s21, 1
      %p38 = por %p36, %p37
      %p39 = scmp.ne.s32.totalorder %s31, %s34
      %p40 = scmp.eq.s32.totalorder %s21, 0
      %p41 = por %p39, %p40
      %p42 = scmp.ne.s32.totalorder %s31, %s34
      %p43 = scmp.eq.s32.totalorder %s26, 1
      %p44 = por %p42, %p43
      %p45 = scmp.ne.s32.totalorder %s34, %s35
      %p46 = scmp.eq.s32.totalorder %s26, 0
      %p47 = por %p45, %p46
      %p48 = scmp.ne.s32.totalorder %s34, %s35
      %p49 = scmp.eq.s32.totalorder %s27, 1
      %p50 = por %p48, %p49
      %p52 = scmp.ne.s32.totalorder %s35, %s51
      %p53 = scmp.eq.s32.totalorder %s27, 0
      %p54 = por %p52, %p53
      %s56 = sadd.s32 %s55, 1
      %p59 = scmp.eq.s32.totalorder %s21, 1
      %p60 = scmp.ne.s32.totalorder %s55, %s57
      %p61 = scmp.eq.s32.totalorder %s21, 0
      %p62 = por %p60, %p61
      %p63 = scmp.ne.s32.totalorder %s55, %s57
      %p64 = scmp.eq.s32.totalorder %s26, 1
      %p65 = por %p63, %p64
      %p66 = scmp.ne.s32.totalorder %s57, %s58
      %p67 = scmp.eq.s32.totalorder %s26, 0
      %p68 = por %p66, %p67
      %p69 = scmp.ne.s32.totalorder %s57, %s58
      %p70 = scmp.eq.s32.totalorder %s27, 1
      %p71 = por %p69, %p70
      %p73 = scmp.ne.s32.totalorder %s58, %s72
      %p74 = scmp.eq.s32.totalorder %s27, 0
      %p75 = por %p73, %p74
      %s76 = ssub.s32 %s21, %s28
      %p77 = scmp.eq.s32.totalorder %s76, 0
      %s79 = sadd.s32 %s78, 1
      %s80 = scalar_select %p77, %s78, %s79
      %p83 = pneg %p77
      %p84 = scmp.eq.s32.totalorder %s21, 1
      %p85 = por %p83, %p84
      %p86 = scmp.ne.s32.totalorder %s78, %s81
      %p87 = scmp.eq.s32.totalorder %s21, 0
      %p88 = por %p86, %p87
      %p89 = scmp.ne.s32.totalorder %s78, %s81
      %p90 = scmp.eq.s32.totalorder %s26, 1
      %p91 = por %p89, %p90
      %p92 = scmp.ne.s32.totalorder %s81, %s82
      %p93 = scmp.eq.s32.totalorder %s26, 0
      %p94 = por %p92, %p93
      %p95 = scmp.ne.s32.totalorder %s81, %s82
      %p96 = scmp.eq.s32.totalorder %s27, 1
      %p97 = por %p95, %p96
      %p99 = scmp.ne.s32.totalorder %s82, %s98
      %p100 = scmp.eq.s32.totalorder %s27, 0
      %p101 = por %p99, %p100
      %p102 = scmp.le.s32.totalorder 1, %s21
      %p103 = scmp.lt.s32.totalorder %s21, 3
      %p104 = pnand %p102, %p103
      %p105 = pneg %p104
      // Predicated region
      $region9: #{tpu_custom_call.1} parent=5 // pred_check
        _
      $region10: #{tpu_custom_call.1} parent=5 // pred_check_branch
        %107 = sbr.rel (%p104) target = $region12
      $region11: #{tpu_custom_call.1} parent=5 // pred_region
        %s108 = ssub.s32 %s21, 1
        // Predicated region
        $region13: #{tpu_custom_call.1} parent=11 // pred_check
          %p109 = pneg %p68
        $region14: #{tpu_custom_call.1} parent=11 // pred_check_branch
          %111 = sbr.rel (%p109) target = $region16
        $region15: #{tpu_custom_call.1} parent=11 // pred_region
          %113 = vsyncadd [#allocation7], 0
          %s114 = sshll.u32 %s2, 4
          %s115 = int_to_ptr.hbm [resolvable:$true] %s114
          %s116 = sshll.u32 [#allocation6], 4
          %s117 = int_to_ptr.vmem [resolvable:$true] %s116
          %122 = dma.hbm_to_vmem [thread:$0]  %s115, 2048, %s117, [#allocation7], 1024, 1024, 64
        $region16: #{tpu_custom_call.1} parent=11 // pred_fallthru
          _
      $region12: #{tpu_custom_call.1} parent=5 // pred_fallthru
        _
      %p123 = scmp.lt.s32.totalorder %s21, 2
      // Predicated region
      $region17: #{tpu_custom_call.1} parent=5 // pred_check
        %p124 = pneg %p123
      $region18: #{tpu_custom_call.1} parent=5 // pred_check_branch
        %126 = sbr.rel (%p124) target = $region20
      $region19: #{tpu_custom_call.1} parent=5 // pred_region
        // Predicated region
        $region21: #{tpu_custom_call.1} parent=19 // pred_check
          %p127 = pneg %p41
        $region22: #{tpu_custom_call.1} parent=19 // pred_check_branch
          %129 = sbr.rel (%p127) target = $region24
        $region23: #{tpu_custom_call.1} parent=19 // pred_region
          %p130 = scmp.lt.s32.totalorder %s21, 1
          %s131 = scalar_select %p130, %s21, 1
          %s132 = smul.addr %s131, 8
          %s133 = scalar_lea.vmem %s1, %s132
        $region24: #{tpu_custom_call.1} parent=19 // pred_fallthru
          _
      $region20: #{tpu_custom_call.1} parent=5 // pred_fallthru
        _
      %p134 = scmp.le.s32.totalorder 1, %s21
      %p135 = scmp.lt.s32.totalorder %s21, 3
      %p136 = pnand %p134, %p135
      %p137 = pneg %p136
      // Predicated region
      $region25: #{tpu_custom_call.1} parent=5 // pred_check
        _
      $region26: #{tpu_custom_call.1} parent=5 // pred_check_branch
        %139 = sbr.rel (%p136) target = $region28
      $region27: #{tpu_custom_call.1} parent=5 // pred_region
        %s140 = ssub.s32 %s21, 1
        // Predicated region
        $region29: #{tpu_custom_call.1} parent=27 // pred_check
          %p141 = pneg %p68
        $region30: #{tpu_custom_call.1} parent=27 // pred_check_branch
          %143 = sbr.rel (%p141) target = $region32
        $region31: #{tpu_custom_call.1} parent=27 // pred_region
          %145 = dma.done [#allocation7], 2048
        $region32: #{tpu_custom_call.1} parent=27 // pred_fallthru
          _
        %p146 = scmp.lt.s32.totalorder %s26, 1
        %s147 = scalar_select %p146, %s26, 1
        %s148 = smul.addr %s147, 8
        %s149 = scalar_lea.vmem %s1, %s148
        %p150 = pneg %p47
        %p151 = pneg %p44
        %p152 = pneg %p68
        %p153 = pneg %p65
        %p154 = pneg %p94
        %p155 = pneg %p91
        %s156 = sand.u32 %s81, 1
        %s157 = scalar_lea.sflag [#allocation8], %s156
        %s158 = sand.u32 %s81, 1
        %s159 = smul.addr %s158, 64
        %s160 = scalar_lea.vmem [#allocation9], %s159
        %p161 = scmp.lt.s32.totalorder %s26, 1
        %s162 = scalar_select %p161, %s26, 1
        %s163 = smul.addr %s162, 8
        %s164 = scalar_lea.vmem %s1, %s163
        %s165 = smul.u32 %s26, 8
        %s166 = sld [smem:[#allocation5 + %s165]]
        %s167 = sshrl.u32 %s166, 3
        %s168 = sand.u32 %s166, 7
        %s169 = smul.u32 %s167, 64
        %s170 = sadd.s32 %s168, %s169
        %s171 = scalar_lea.vmem [#allocation6], %s170
        // Predicated region
        $region33: #{tpu_custom_call.1} parent=27 // pred_check
          _
        $region34: #{tpu_custom_call.1} parent=27 // pred_check_branch
          %173 = sbr.rel target = $region36
        $region35: #{tpu_custom_call.1} parent=27 // pred_region
          // Predicated region
          $region48: #{tpu_custom_call.1} parent=35 // pred_check
            _
          $region49: #{tpu_custom_call.1} parent=35 // pred_check_branch
            %203 = sbr.rel (0) target = $region51
          $region50: #{tpu_custom_call.1} parent=35 // pred_region
            loop: start=0, step=1, limit=1
            $region52: #{tpu_custom_call.1} parent=50 // loop_pre_header
              _
            $region53: #{tpu_custom_call.1} parent=50 // loop_header
              %s205 = sphi 0, %s209
              %p206 = scmp.ge.s32.totalorder %s205, 1
              %s210 = sphi %s171, %s171
              %s211 = sphi [#allocation2], [#allocation2]
            $region54: #{tpu_custom_call.1} parent=50 // loop_header_branch
              %208 = sbr.rel (%p206) target = $region58
            $region55: #{tpu_custom_call.1} parent=50 // loop_body
              _
            $region56: #{tpu_custom_call.1} parent=50 // loop_footer
              %s209 = sadd.s32 1, %s205
            $region57: #{tpu_custom_call.1} parent=50 // loop_footer_branch
              %204 = sbr.rel target = $region53
            $region58: #{tpu_custom_call.1} parent=50 // loop_exit
              _
            %s213 = ssub.s32 2, 1
            loop: start=0, step=1, limit=1
            $region59: #{tpu_custom_call.1} parent=50 // loop_pre_header
              _
            $region60: #{tpu_custom_call.1} parent=50 // loop_header
              %s215 = sphi 0, %s219
              %p216 = scmp.ge.s32.totalorder %s215, 1
              %s220 = sphi %s171, %s171
              %s221 = sphi [#allocation2], [#allocation2]
            $region61: #{tpu_custom_call.1} parent=50 // loop_header_branch
              %218 = sbr.rel (%p216) target = $region65
            $region62: #{tpu_custom_call.1} parent=50 // loop_body
              %v222 = vld [vmem:[%s220] sm:%s213]
              %223 = vst [vmem:[%s221] sm:%s213] %v222
              %v224 = vld [vmem:[%s220 + $0x8] sm:%s213]
              %225 = vst [vmem:[%s221 + $0x8] sm:%s213] %v224
              %v226 = vld [vmem:[%s220 + $0x10] sm:%s213]
              %227 = vst [vmem:[%s221 + $0x10] sm:%s213] %v226
              %v228 = vld [vmem:[%s220 + $0x18] sm:%s213]
              %229 = vst [vmem:[%s221 + $0x18] sm:%s213] %v228
              %v230 = vld [vmem:[%s220 + $0x20] sm:%s213]
              %231 = vst [vmem:[%s221 + $0x20] sm:%s213] %v230
              %v232 = vld [vmem:[%s220 + $0x28] sm:%s213]
              %233 = vst [vmem:[%s221 + $0x28] sm:%s213] %v232
              %v234 = vld [vmem:[%s220 + $0x30] sm:%s213]
              %235 = vst [vmem:[%s221 + $0x30] sm:%s213] %v234
              %v236 = vld [vmem:[%s220 + $0x38] sm:%s213]
              %237 = vst [vmem:[%s221 + $0x38] sm:%s213] %v236
            $region63: #{tpu_custom_call.1} parent=50 // loop_footer
              %s219 = sadd.s32 1, %s215
            $region64: #{tpu_custom_call.1} parent=50 // loop_footer_branch
              %214 = sbr.rel target = $region60
            $region65: #{tpu_custom_call.1} parent=50 // loop_exit
              _
          $region51: #{tpu_custom_call.1} parent=35 // pred_fallthru
            _
        $region36: #{tpu_custom_call.1} parent=27 // pred_fallthru
          _
        // Predicated region
        $region37: #{tpu_custom_call.1} parent=27 // pred_check
          _
        $region38: #{tpu_custom_call.1} parent=27 // pred_check_branch
          %175 = sbr.rel (0) target = $region40
        $region39: #{tpu_custom_call.1} parent=27 // pred_region
          %s177 = ssub.s32 2, 1
          loop: start=0, step=1, limit=1
          $region41: #{tpu_custom_call.1} parent=39 // loop_pre_header
            _
          $region42: #{tpu_custom_call.1} parent=39 // loop_header
            %s179 = sphi 0, %s183
            %p180 = scmp.ge.s32.totalorder %s179, 1
            %s184 = sphi %s171, %s171
            %s185 = sphi [#allocation2], [#allocation2]
          $region43: #{tpu_custom_call.1} parent=39 // loop_header_branch
            %182 = sbr.rel (%p180) target = $region47
          $region44: #{tpu_custom_call.1} parent=39 // loop_body
            %v186 = vld [vmem:[%s184] sm:%s177]
            %187 = vst [vmem:[%s185] sm:%s177] %v186
            %v188 = vld [vmem:[%s184 + $0x8] sm:%s177]
            %189 = vst [vmem:[%s185 + $0x8] sm:%s177] %v188
            %v190 = vld [vmem:[%s184 + $0x10] sm:%s177]
            %191 = vst [vmem:[%s185 + $0x10] sm:%s177] %v190
            %v192 = vld [vmem:[%s184 + $0x18] sm:%s177]
            %193 = vst [vmem:[%s185 + $0x18] sm:%s177] %v192
            %v194 = vld [vmem:[%s184 + $0x20] sm:%s177]
            %195 = vst [vmem:[%s185 + $0x20] sm:%s177] %v194
            %v196 = vld [vmem:[%s184 + $0x28] sm:%s177]
            %197 = vst [vmem:[%s185 + $0x28] sm:%s177] %v196
            %v198 = vld [vmem:[%s184 + $0x30] sm:%s177]
            %199 = vst [vmem:[%s185 + $0x30] sm:%s177] %v198
            %v200 = vld [vmem:[%s184 + $0x38] sm:%s177]
            %201 = vst [vmem:[%s185 + $0x38] sm:%s177] %v200
          $region45: #{tpu_custom_call.1} parent=39 // loop_footer
            %s183 = sadd.s32 1, %s179
          $region46: #{tpu_custom_call.1} parent=39 // loop_footer_branch
            %178 = sbr.rel target = $region42
          $region47: #{tpu_custom_call.1} parent=39 // loop_exit
            _
        $region40: #{tpu_custom_call.1} parent=27 // pred_fallthru
          _
        // Predicated region
        $region66: #{tpu_custom_call.1} parent=27 // pred_check
          _
        $region67: #{tpu_custom_call.1} parent=27 // pred_check_branch
          %240 = sbr.rel (0) target = $region69
        $region68: #{tpu_custom_call.1} parent=27 // pred_region
          %241 = vsyncadd [#allocation3], 128
        $region69: #{tpu_custom_call.1} parent=27 // pred_fallthru
          _
        %s242 = sadd.s32 %s165, 1
        %s243 = sld [smem:[#allocation5 + %s242]]
        %s244 = sshrl.u32 %s243, 3
        %s245 = sand.u32 %s243, 7
        %s246 = smul.u32 %s244, 64
        %s247 = sadd.s32 %s245, %s246
        %s248 = scalar_lea.vmem [#allocation6], %s247
        %s249 = scalar_lea.vmem [#allocation2], 1
        // Predicated region
        $region70: #{tpu_custom_call.1} parent=27 // pred_check
          _
        $region71: #{tpu_custom_call.1} parent=27 // pred_check_branch
          %251 = sbr.rel target = $region73
        $region72: #{tpu_custom_call.1} parent=27 // pred_region
          // Predicated region
          $region85: #{tpu_custom_call.1} parent=72 // pred_check
            _
          $region86: #{tpu_custom_call.1} parent=72 // pred_check_branch
            %281 = sbr.rel (0) target = $region88
          $region87: #{tpu_custom_call.1} parent=72 // pred_region
            loop: start=0, step=1, limit=1
            $region89: #{tpu_custom_call.1} parent=87 // loop_pre_header
              _
            $region90: #{tpu_custom_call.1} parent=87 // loop_header
              %s283 = sphi 0, %s287
              %p284 = scmp.ge.s32.totalorder %s283, 1
              %s288 = sphi %s248, %s248
              %s289 = sphi %s249, %s249
            $region91: #{tpu_custom_call.1} parent=87 // loop_header_branch
              %286 = sbr.rel (%p284) target = $region95
            $region92: #{tpu_custom_call.1} parent=87 // loop_body
              _
            $region93: #{tpu_custom_call.1} parent=87 // loop_footer
              %s287 = sadd.s32 1, %s283
            $region94: #{tpu_custom_call.1} parent=87 // loop_footer_branch
              %282 = sbr.rel target = $region90
            $region95: #{tpu_custom_call.1} parent=87 // loop_exit
              _
            %s291 = ssub.s32 2, 1
            loop: start=0, step=1, limit=1
            $region96: #{tpu_custom_call.1} parent=87 // loop_pre_header
              _
            $region97: #{tpu_custom_call.1} parent=87 // loop_header
              %s293 = sphi 0, %s297
              %p294 = scmp.ge.s32.totalorder %s293, 1
              %s298 = sphi %s248, %s248
              %s299 = sphi %s249, %s249
            $region98: #{tpu_custom_call.1} parent=87 // loop_header_branch
              %296 = sbr.rel (%p294) target = $region102
            $region99: #{tpu_custom_call.1} parent=87 // loop_body
              %v300 = vld [vmem:[%s298] sm:%s291]
              %301 = vst [vmem:[%s299] sm:%s291] %v300
              %v302 = vld [vmem:[%s298 + $0x8] sm:%s291]
              %303 = vst [vmem:[%s299 + $0x8] sm:%s291] %v302
              %v304 = vld [vmem:[%s298 + $0x10] sm:%s291]
              %305 = vst [vmem:[%s299 + $0x10] sm:%s291] %v304
              %v306 = vld [vmem:[%s298 + $0x18] sm:%s291]
              %307 = vst [vmem:[%s299 + $0x18] sm:%s291] %v306
              %v308 = vld [vmem:[%s298 + $0x20] sm:%s291]
              %309 = vst [vmem:[%s299 + $0x20] sm:%s291] %v308
              %v310 = vld [vmem:[%s298 + $0x28] sm:%s291]
              %311 = vst [vmem:[%s299 + $0x28] sm:%s291] %v310
              %v312 = vld [vmem:[%s298 + $0x30] sm:%s291]
              %313 = vst [vmem:[%s299 + $0x30] sm:%s291] %v312
              %v314 = vld [vmem:[%s298 + $0x38] sm:%s291]
              %315 = vst [vmem:[%s299 + $0x38] sm:%s291] %v314
            $region100: #{tpu_custom_call.1} parent=87 // loop_footer
              %s297 = sadd.s32 1, %s293
            $region101: #{tpu_custom_call.1} parent=87 // loop_footer_branch
              %292 = sbr.rel target = $region97
            $region102: #{tpu_custom_call.1} parent=87 // loop_exit
              _
          $region88: #{tpu_custom_call.1} parent=72 // pred_fallthru
            _
        $region73: #{tpu_custom_call.1} parent=27 // pred_fallthru
          _
        // Predicated region
        $region74: #{tpu_custom_call.1} parent=27 // pred_check
          _
        $region75: #{tpu_custom_call.1} parent=27 // pred_check_branch
          %253 = sbr.rel (0) target = $region77
        $region76: #{tpu_custom_call.1} parent=27 // pred_region
          %s255 = ssub.s32 2, 1
          loop: start=0, step=1, limit=1
          $region78: #{tpu_custom_call.1} parent=76 // loop_pre_header
            _
          $region79: #{tpu_custom_call.1} parent=76 // loop_header
            %s257 = sphi 0, %s261
            %p258 = scmp.ge.s32.totalorder %s257, 1
            %s262 = sphi %s248, %s248
            %s263 = sphi %s249, %s249
          $region80: #{tpu_custom_call.1} parent=76 // loop_header_branch
            %260 = sbr.rel (%p258) target = $region84
          $region81: #{tpu_custom_call.1} parent=76 // loop_body
            %v264 = vld [vmem:[%s262] sm:%s255]
            %265 = vst [vmem:[%s263] sm:%s255] %v264
            %v266 = vld [vmem:[%s262 + $0x8] sm:%s255]
            %267 = vst [vmem:[%s263 + $0x8] sm:%s255] %v266
            %v268 = vld [vmem:[%s262 + $0x10] sm:%s255]
            %269 = vst [vmem:[%s263 + $0x10] sm:%s255] %v268
            %v270 = vld [vmem:[%s262 + $0x18] sm:%s255]
            %271 = vst [vmem:[%s263 + $0x18] sm:%s255] %v270
            %v272 = vld [vmem:[%s262 + $0x20] sm:%s255]
            %273 = vst [vmem:[%s263 + $0x20] sm:%s255] %v272
            %v274 = vld [vmem:[%s262 + $0x28] sm:%s255]
            %275 = vst [vmem:[%s263 + $0x28] sm:%s255] %v274
            %v276 = vld [vmem:[%s262 + $0x30] sm:%s255]
            %277 = vst [vmem:[%s263 + $0x30] sm:%s255] %v276
            %v278 = vld [vmem:[%s262 + $0x38] sm:%s255]
            %279 = vst [vmem:[%s263 + $0x38] sm:%s255] %v278
          $region82: #{tpu_custom_call.1} parent=76 // loop_footer
            %s261 = sadd.s32 1, %s257
          $region83: #{tpu_custom_call.1} parent=76 // loop_footer_branch
            %256 = sbr.rel target = $region79
          $region84: #{tpu_custom_call.1} parent=76 // loop_exit
            _
        $region77: #{tpu_custom_call.1} parent=27 // pred_fallthru
          _
        // Predicated region
        $region103: #{tpu_custom_call.1} parent=27 // pred_check
          _
        $region104: #{tpu_custom_call.1} parent=27 // pred_check_branch
          %318 = sbr.rel (0) target = $region106
        $region105: #{tpu_custom_call.1} parent=27 // pred_region
          %319 = vsyncadd [#allocation3], 128
        $region106: #{tpu_custom_call.1} parent=27 // pred_fallthru
          _
        %s320 = sadd.s32 %s165, 2
        %s321 = sld [smem:[#allocation5 + %s320]]
        %s322 = sshrl.u32 %s321, 3
        %s323 = sand.u32 %s321, 7
        %s324 = smul.u32 %s322, 64
        %s325 = sadd.s32 %s323, %s324
        %s326 = scalar_lea.vmem [#allocation6], %s325
        %s327 = scalar_lea.vmem [#allocation2], 2
        // Predicated region
        $region107: #{tpu_custom_call.1} parent=27 // pred_check
          _
        $region108: #{tpu_custom_call.1} parent=27 // pred_check_branch
          %329 = sbr.rel target = $region110
        $region109: #{tpu_custom_call.1} parent=27 // pred_region
          // Predicated region
          $region122: #{tpu_custom_call.1} parent=109 // pred_check
            _
          $region123: #{tpu_custom_call.1} parent=109 // pred_check_branch
            %359 = sbr.rel (0) target = $region125
          $region124: #{tpu_custom_call.1} parent=109 // pred_region
            loop: start=0, step=1, limit=1
            $region126: #{tpu_custom_call.1} parent=124 // loop_pre_header
              _
            $region127: #{tpu_custom_call.1} parent=124 // loop_header
              %s361 = sphi 0, %s365
              %p362 = scmp.ge.s32.totalorder %s361, 1
              %s366 = sphi %s326, %s326
              %s367 = sphi %s327, %s327
            $region128: #{tpu_custom_call.1} parent=124 // loop_header_branch
              %364 = sbr.rel (%p362) target = $region132
            $region129: #{tpu_custom_call.1} parent=124 // loop_body
              _
            $region130: #{tpu_custom_call.1} parent=124 // loop_footer
              %s365 = sadd.s32 1, %s361
            $region131: #{tpu_custom_call.1} parent=124 // loop_footer_branch
              %360 = sbr.rel target = $region127
            $region132: #{tpu_custom_call.1} parent=124 // loop_exit
              _
            %s369 = ssub.s32 2, 1
            loop: start=0, step=1, limit=1
            $region133: #{tpu_custom_call.1} parent=124 // loop_pre_header
              _
            $region134: #{tpu_custom_call.1} parent=124 // loop_header
              %s371 = sphi 0, %s375
              %p372 = scmp.ge.s32.totalorder %s371, 1
              %s376 = sphi %s326, %s326
              %s377 = sphi %s327, %s327
            $region135: #{tpu_custom_call.1} parent=124 // loop_header_branch
              %374 = sbr.rel (%p372) target = $region139
            $region136: #{tpu_custom_call.1} parent=124 // loop_body
              %v378 = vld [vmem:[%s376] sm:%s369]
              %379 = vst [vmem:[%s377] sm:%s369] %v378
              %v380 = vld [vmem:[%s376 + $0x8] sm:%s369]
              %381 = vst [vmem:[%s377 + $0x8] sm:%s369] %v380
              %v382 = vld [vmem:[%s376 + $0x10] sm:%s369]
              %383 = vst [vmem:[%s377 + $0x10] sm:%s369] %v382
              %v384 = vld [vmem:[%s376 + $0x18] sm:%s369]
              %385 = vst [vmem:[%s377 + $0x18] sm:%s369] %v384
              %v386 = vld [vmem:[%s376 + $0x20] sm:%s369]
              %387 = vst [vmem:[%s377 + $0x20] sm:%s369] %v386
              %v388 = vld [vmem:[%s376 + $0x28] sm:%s369]
              %389 = vst [vmem:[%s377 + $0x28] sm:%s369] %v388
              %v390 = vld [vmem:[%s376 + $0x30] sm:%s369]
              %391 = vst [vmem:[%s377 + $0x30] sm:%s369] %v390
              %v392 = vld [vmem:[%s376 + $0x38] sm:%s369]
              %393 = vst [vmem:[%s377 + $0x38] sm:%s369] %v392
            $region137: #{tpu_custom_call.1} parent=124 // loop_footer
              %s375 = sadd.s32 1, %s371
            $region138: #{tpu_custom_call.1} parent=124 // loop_footer_branch
              %370 = sbr.rel target = $region134
            $region139: #{tpu_custom_call.1} parent=124 // loop_exit
              _
          $region125: #{tpu_custom_call.1} parent=109 // pred_fallthru
            _
        $region110: #{tpu_custom_call.1} parent=27 // pred_fallthru
          _
        // Predicated region
        $region111: #{tpu_custom_call.1} parent=27 // pred_check
          _
        $region112: #{tpu_custom_call.1} parent=27 // pred_check_branch
          %331 = sbr.rel (0) target = $region114
        $region113: #{tpu_custom_call.1} parent=27 // pred_region
          %s333 = ssub.s32 2, 1
          loop: start=0, step=1, limit=1
          $region115: #{tpu_custom_call.1} parent=113 // loop_pre_header
            _
          $region116: #{tpu_custom_call.1} parent=113 // loop_header
            %s335 = sphi 0, %s339
            %p336 = scmp.ge.s32.totalorder %s335, 1
            %s340 = sphi %s326, %s326
            %s341 = sphi %s327, %s327
          $region117: #{tpu_custom_call.1} parent=113 // loop_header_branch
            %338 = sbr.rel (%p336) target = $region121
          $region118: #{tpu_custom_call.1} parent=113 // loop_body
            %v342 = vld [vmem:[%s340] sm:%s333]
            %343 = vst [vmem:[%s341] sm:%s333] %v342
            %v344 = vld [vmem:[%s340 + $0x8] sm:%s333]
            %345 = vst [vmem:[%s341 + $0x8] sm:%s333] %v344
            %v346 = vld [vmem:[%s340 + $0x10] sm:%s333]
            %347 = vst [vmem:[%s341 + $0x10] sm:%s333] %v346
            %v348 = vld [vmem:[%s340 + $0x18] sm:%s333]
            %349 = vst [vmem:[%s341 + $0x18] sm:%s333] %v348
            %v350 = vld [vmem:[%s340 + $0x20] sm:%s333]
            %351 = vst [vmem:[%s341 + $0x20] sm:%s333] %v350
            %v352 = vld [vmem:[%s340 + $0x28] sm:%s333]
            %353 = vst [vmem:[%s341 + $0x28] sm:%s333] %v352
            %v354 = vld [vmem:[%s340 + $0x30] sm:%s333]
            %355 = vst [vmem:[%s341 + $0x30] sm:%s333] %v354
            %v356 = vld [vmem:[%s340 + $0x38] sm:%s333]
            %357 = vst [vmem:[%s341 + $0x38] sm:%s333] %v356
          $region119: #{tpu_custom_call.1} parent=113 // loop_footer
            %s339 = sadd.s32 1, %s335
          $region120: #{tpu_custom_call.1} parent=113 // loop_footer_branch
            %334 = sbr.rel target = $region116
          $region121: #{tpu_custom_call.1} parent=113 // loop_exit
            _
        $region114: #{tpu_custom_call.1} parent=27 // pred_fallthru
          _
        // Predicated region
        $region140: #{tpu_custom_call.1} parent=27 // pred_check
          _
        $region141: #{tpu_custom_call.1} parent=27 // pred_check_branch
          %396 = sbr.rel (0) target = $region143
        $region142: #{tpu_custom_call.1} parent=27 // pred_region
          %397 = vsyncadd [#allocation3], 128
        $region143: #{tpu_custom_call.1} parent=27 // pred_fallthru
          _
        %s398 = sadd.s32 %s165, 3
        %s399 = sld [smem:[#allocation5 + %s398]]
        %s400 = sshrl.u32 %s399, 3
        %s401 = sand.u32 %s399, 7
        %s402 = smul.u32 %s400, 64
        %s403 = sadd.s32 %s401, %s402
        %s404 = scalar_lea.vmem [#allocation6], %s403
        %s405 = scalar_lea.vmem [#allocation2], 3
        // Predicated region
        $region144: #{tpu_custom_call.1} parent=27 // pred_check
          _
        $region145: #{tpu_custom_call.1} parent=27 // pred_check_branch
          %407 = sbr.rel target = $region147
        $region146: #{tpu_custom_call.1} parent=27 // pred_region
          // Predicated region
          $region159: #{tpu_custom_call.1} parent=146 // pred_check
            _
          $region160: #{tpu_custom_call.1} parent=146 // pred_check_branch
            %437 = sbr.rel (0) target = $region162
          $region161: #{tpu_custom_call.1} parent=146 // pred_region
            loop: start=0, step=1, limit=1
            $region163: #{tpu_custom_call.1} parent=161 // loop_pre_header
              _
            $region164: #{tpu_custom_call.1} parent=161 // loop_header
              %s439 = sphi 0, %s443
              %p440 = scmp.ge.s32.totalorder %s439, 1
              %s444 = sphi %s404, %s404
              %s445 = sphi %s405, %s405
            $region165: #{tpu_custom_call.1} parent=161 // loop_header_branch
              %442 = sbr.rel (%p440) target = $region169
            $region166: #{tpu_custom_call.1} parent=161 // loop_body
              _
            $region167: #{tpu_custom_call.1} parent=161 // loop_footer
              %s443 = sadd.s32 1, %s439
            $region168: #{tpu_custom_call.1} parent=161 // loop_footer_branch
              %438 = sbr.rel target = $region164
            $region169: #{tpu_custom_call.1} parent=161 // loop_exit
              _
            %s447 = ssub.s32 2, 1
            loop: start=0, step=1, limit=1
            $region170: #{tpu_custom_call.1} parent=161 // loop_pre_header
              _
            $region171: #{tpu_custom_call.1} parent=161 // loop_header
              %s449 = sphi 0, %s453
              %p450 = scmp.ge.s32.totalorder %s449, 1
              %s454 = sphi %s404, %s404
              %s455 = sphi %s405, %s405
            $region172: #{tpu_custom_call.1} parent=161 // loop_header_branch
              %452 = sbr.rel (%p450) target = $region176
            $region173: #{tpu_custom_call.1} parent=161 // loop_body
              %v456 = vld [vmem:[%s454] sm:%s447]
              %457 = vst [vmem:[%s455] sm:%s447] %v456
              %v458 = vld [vmem:[%s454 + $0x8] sm:%s447]
              %459 = vst [vmem:[%s455 + $0x8] sm:%s447] %v458
              %v460 = vld [vmem:[%s454 + $0x10] sm:%s447]
              %461 = vst [vmem:[%s455 + $0x10] sm:%s447] %v460
              %v462 = vld [vmem:[%s454 + $0x18] sm:%s447]
              %463 = vst [vmem:[%s455 + $0x18] sm:%s447] %v462
              %v464 = vld [vmem:[%s454 + $0x20] sm:%s447]
              %465 = vst [vmem:[%s455 + $0x20] sm:%s447] %v464
              %v466 = vld [vmem:[%s454 + $0x28] sm:%s447]
              %467 = vst [vmem:[%s455 + $0x28] sm:%s447] %v466
              %v468 = vld [vmem:[%s454 + $0x30] sm:%s447]
              %469 = vst [vmem:[%s455 + $0x30] sm:%s447] %v468
              %v470 = vld [vmem:[%s454 + $0x38] sm:%s447]
              %471 = vst [vmem:[%s455 + $0x38] sm:%s447] %v470
            $region174: #{tpu_custom_call.1} parent=161 // loop_footer
              %s453 = sadd.s32 1, %s449
            $region175: #{tpu_custom_call.1} parent=161 // loop_footer_branch
              %448 = sbr.rel target = $region171
            $region176: #{tpu_custom_call.1} parent=161 // loop_exit
              _
          $region162: #{tpu_custom_call.1} parent=146 // pred_fallthru
            _
        $region147: #{tpu_custom_call.1} parent=27 // pred_fallthru
          _
        // Predicated region
        $region148: #{tpu_custom_call.1} parent=27 // pred_check
          _
        $region149: #{tpu_custom_call.1} parent=27 // pred_check_branch
          %409 = sbr.rel (0) target = $region151
        $region150: #{tpu_custom_call.1} parent=27 // pred_region
          %s411 = ssub.s32 2, 1
          loop: start=0, step=1, limit=1
          $region152: #{tpu_custom_call.1} parent=150 // loop_pre_header
            _
          $region153: #{tpu_custom_call.1} parent=150 // loop_header
            %s413 = sphi 0, %s417
            %p414 = scmp.ge.s32.totalorder %s413, 1
            %s418 = sphi %s404, %s404
            %s419 = sphi %s405, %s405
          $region154: #{tpu_custom_call.1} parent=150 // loop_header_branch
            %416 = sbr.rel (%p414) target = $region158
          $region155: #{tpu_custom_call.1} parent=150 // loop_body
            %v420 = vld [vmem:[%s418] sm:%s411]
            %421 = vst [vmem:[%s419] sm:%s411] %v420
            %v422 = vld [vmem:[%s418 + $0x8] sm:%s411]
            %423 = vst [vmem:[%s419 + $0x8] sm:%s411] %v422
            %v424 = vld [vmem:[%s418 + $0x10] sm:%s411]
            %425 = vst [vmem:[%s419 + $0x10] sm:%s411] %v424
            %v426 = vld [vmem:[%s418 + $0x18] sm:%s411]
            %427 = vst [vmem:[%s419 + $0x18] sm:%s411] %v426
            %v428 = vld [vmem:[%s418 + $0x20] sm:%s411]
            %429 = vst [vmem:[%s419 + $0x20] sm:%s411] %v428
            %v430 = vld [vmem:[%s418 + $0x28] sm:%s411]
            %431 = vst [vmem:[%s419 + $0x28] sm:%s411] %v430
            %v432 = vld [vmem:[%s418 + $0x30] sm:%s411]
            %433 = vst [vmem:[%s419 + $0x30] sm:%s411] %v432
            %v434 = vld [vmem:[%s418 + $0x38] sm:%s411]
            %435 = vst [vmem:[%s419 + $0x38] sm:%s411] %v434
          $region156: #{tpu_custom_call.1} parent=150 // loop_footer
            %s417 = sadd.s32 1, %s413
          $region157: #{tpu_custom_call.1} parent=150 // loop_footer_branch
            %412 = sbr.rel target = $region153
          $region158: #{tpu_custom_call.1} parent=150 // loop_exit
            _
        $region151: #{tpu_custom_call.1} parent=27 // pred_fallthru
          _
        // Predicated region
        $region177: #{tpu_custom_call.1} parent=27 // pred_check
          _
        $region178: #{tpu_custom_call.1} parent=27 // pred_check_branch
          %474 = sbr.rel (0) target = $region180
        $region179: #{tpu_custom_call.1} parent=27 // pred_region
          %475 = vsyncadd [#allocation3], 128
        $region180: #{tpu_custom_call.1} parent=27 // pred_fallthru
          _
        %s476 = sadd.s32 %s165, 4
        %s477 = sld [smem:[#allocation5 + %s476]]
        %s478 = sshrl.u32 %s477, 3
        %s479 = sand.u32 %s477, 7
        %s480 = smul.u32 %s478, 64
        %s481 = sadd.s32 %s479, %s480
        %s482 = scalar_lea.vmem [#allocation6], %s481
        %s483 = scalar_lea.vmem [#allocation2], 4
        // Predicated region
        $region181: #{tpu_custom_call.1} parent=27 // pred_check
          _
        $region182: #{tpu_custom_call.1} parent=27 // pred_check_branch
          %485 = sbr.rel target = $region184
        $region183: #{tpu_custom_call.1} parent=27 // pred_region
          // Predicated region
          $region196: #{tpu_custom_call.1} parent=183 // pred_check
            _
          $region197: #{tpu_custom_call.1} parent=183 // pred_check_branch
            %515 = sbr.rel (0) target = $region199
          $region198: #{tpu_custom_call.1} parent=183 // pred_region
            loop: start=0, step=1, limit=1
            $region200: #{tpu_custom_call.1} parent=198 // loop_pre_header
              _
            $region201: #{tpu_custom_call.1} parent=198 // loop_header
              %s517 = sphi 0, %s521
              %p518 = scmp.ge.s32.totalorder %s517, 1
              %s522 = sphi %s482, %s482
              %s523 = sphi %s483, %s483
            $region202: #{tpu_custom_call.1} parent=198 // loop_header_branch
              %520 = sbr.rel (%p518) target = $region206
            $region203: #{tpu_custom_call.1} parent=198 // loop_body
              _
            $region204: #{tpu_custom_call.1} parent=198 // loop_footer
              %s521 = sadd.s32 1, %s517
            $region205: #{tpu_custom_call.1} parent=198 // loop_footer_branch
              %516 = sbr.rel target = $region201
            $region206: #{tpu_custom_call.1} parent=198 // loop_exit
              _
            %s525 = ssub.s32 2, 1
            loop: start=0, step=1, limit=1
            $region207: #{tpu_custom_call.1} parent=198 // loop_pre_header
              _
            $region208: #{tpu_custom_call.1} parent=198 // loop_header
              %s527 = sphi 0, %s531
              %p528 = scmp.ge.s32.totalorder %s527, 1
              %s532 = sphi %s482, %s482
              %s533 = sphi %s483, %s483
            $region209: #{tpu_custom_call.1} parent=198 // loop_header_branch
              %530 = sbr.rel (%p528) target = $region213
            $region210: #{tpu_custom_call.1} parent=198 // loop_body
              %v534 = vld [vmem:[%s532] sm:%s525]
              %535 = vst [vmem:[%s533] sm:%s525] %v534
              %v536 = vld [vmem:[%s532 + $0x8] sm:%s525]
              %537 = vst [vmem:[%s533 + $0x8] sm:%s525] %v536
              %v538 = vld [vmem:[%s532 + $0x10] sm:%s525]
              %539 = vst [vmem:[%s533 + $0x10] sm:%s525] %v538
              %v540 = vld [vmem:[%s532 + $0x18] sm:%s525]
              %541 = vst [vmem:[%s533 + $0x18] sm:%s525] %v540
              %v542 = vld [vmem:[%s532 + $0x20] sm:%s525]
              %543 = vst [vmem:[%s533 + $0x20] sm:%s525] %v542
              %v544 = vld [vmem:[%s532 + $0x28] sm:%s525]
              %545 = vst [vmem:[%s533 + $0x28] sm:%s525] %v544
              %v546 = vld [vmem:[%s532 + $0x30] sm:%s525]
              %547 = vst [vmem:[%s533 + $0x30] sm:%s525] %v546
              %v548 = vld [vmem:[%s532 + $0x38] sm:%s525]
              %549 = vst [vmem:[%s533 + $0x38] sm:%s525] %v548
            $region211: #{tpu_custom_call.1} parent=198 // loop_footer
              %s531 = sadd.s32 1, %s527
            $region212: #{tpu_custom_call.1} parent=198 // loop_footer_branch
              %526 = sbr.rel target = $region208
            $region213: #{tpu_custom_call.1} parent=198 // loop_exit
              _
          $region199: #{tpu_custom_call.1} parent=183 // pred_fallthru
            _
        $region184: #{tpu_custom_call.1} parent=27 // pred_fallthru
          _
        // Predicated region
        $region185: #{tpu_custom_call.1} parent=27 // pred_check
          _
        $region186: #{tpu_custom_call.1} parent=27 // pred_check_branch
          %487 = sbr.rel (0) target = $region188
        $region187: #{tpu_custom_call.1} parent=27 // pred_region
          %s489 = ssub.s32 2, 1
          loop: start=0, step=1, limit=1
          $region189: #{tpu_custom_call.1} parent=187 // loop_pre_header
            _
          $region190: #{tpu_custom_call.1} parent=187 // loop_header
            %s491 = sphi 0, %s495
            %p492 = scmp.ge.s32.totalorder %s491, 1
            %s496 = sphi %s482, %s482
            %s497 = sphi %s483, %s483
          $region191: #{tpu_custom_call.1} parent=187 // loop_header_branch
            %494 = sbr.rel (%p492) target = $region195
          $region192: #{tpu_custom_call.1} parent=187 // loop_body
            %v498 = vld [vmem:[%s496] sm:%s489]
            %499 = vst [vmem:[%s497] sm:%s489] %v498
            %v500 = vld [vmem:[%s496 + $0x8] sm:%s489]
            %501 = vst [vmem:[%s497 + $0x8] sm:%s489] %v500
            %v502 = vld [vmem:[%s496 + $0x10] sm:%s489]
            %503 = vst [vmem:[%s497 + $0x10] sm:%s489] %v502
            %v504 = vld [vmem:[%s496 + $0x18] sm:%s489]
            %505 = vst [vmem:[%s497 + $0x18] sm:%s489] %v504
            %v506 = vld [vmem:[%s496 + $0x20] sm:%s489]
            %507 = vst [vmem:[%s497 + $0x20] sm:%s489] %v506
            %v508 = vld [vmem:[%s496 + $0x28] sm:%s489]
            %509 = vst [vmem:[%s497 + $0x28] sm:%s489] %v508
            %v510 = vld [vmem:[%s496 + $0x30] sm:%s489]
            %511 = vst [vmem:[%s497 + $0x30] sm:%s489] %v510
            %v512 = vld [vmem:[%s496 + $0x38] sm:%s489]
            %513 = vst [vmem:[%s497 + $0x38] sm:%s489] %v512
          $region193: #{tpu_custom_call.1} parent=187 // loop_footer
            %s495 = sadd.s32 1, %s491
          $region194: #{tpu_custom_call.1} parent=187 // loop_footer_branch
            %490 = sbr.rel target = $region190
          $region195: #{tpu_custom_call.1} parent=187 // loop_exit
            _
        $region188: #{tpu_custom_call.1} parent=27 // pred_fallthru
          _
        // Predicated region
        $region214: #{tpu_custom_call.1} parent=27 // pred_check
          _
        $region215: #{tpu_custom_call.1} parent=27 // pred_check_branch
          %552 = sbr.rel (0) target = $region217
        $region216: #{tpu_custom_call.1} parent=27 // pred_region
          %553 = vsyncadd [#allocation3], 128
        $region217: #{tpu_custom_call.1} parent=27 // pred_fallthru
          _
        %s554 = sadd.s32 %s165, 5
        %s555 = sld [smem:[#allocation5 + %s554]]
        %s556 = sshrl.u32 %s555, 3
        %s557 = sand.u32 %s555, 7
        %s558 = smul.u32 %s556, 64
        %s559 = sadd.s32 %s557, %s558
        %s560 = scalar_lea.vmem [#allocation6], %s559
        %s561 = scalar_lea.vmem [#allocation2], 5
        // Predicated region
        $region218: #{tpu_custom_call.1} parent=27 // pred_check
          _
        $region219: #{tpu_custom_call.1} parent=27 // pred_check_branch
          %563 = sbr.rel target = $region221
        $region220: #{tpu_custom_call.1} parent=27 // pred_region
          // Predicated region
          $region233: #{tpu_custom_call.1} parent=220 // pred_check
            _
          $region234: #{tpu_custom_call.1} parent=220 // pred_check_branch
            %593 = sbr.rel (0) target = $region236
          $region235: #{tpu_custom_call.1} parent=220 // pred_region
            loop: start=0, step=1, limit=1
            $region237: #{tpu_custom_call.1} parent=235 // loop_pre_header
              _
            $region238: #{tpu_custom_call.1} parent=235 // loop_header
              %s595 = sphi 0, %s599
              %p596 = scmp.ge.s32.totalorder %s595, 1
              %s600 = sphi %s560, %s560
              %s601 = sphi %s561, %s561
            $region239: #{tpu_custom_call.1} parent=235 // loop_header_branch
              %598 = sbr.rel (%p596) target = $region243
            $region240: #{tpu_custom_call.1} parent=235 // loop_body
              _
            $region241: #{tpu_custom_call.1} parent=235 // loop_footer
              %s599 = sadd.s32 1, %s595
            $region242: #{tpu_custom_call.1} parent=235 // loop_footer_branch
              %594 = sbr.rel target = $region238
            $region243: #{tpu_custom_call.1} parent=235 // loop_exit
              _
            %s603 = ssub.s32 2, 1
            loop: start=0, step=1, limit=1
            $region244: #{tpu_custom_call.1} parent=235 // loop_pre_header
              _
            $region245: #{tpu_custom_call.1} parent=235 // loop_header
              %s605 = sphi 0, %s609
              %p606 = scmp.ge.s32.totalorder %s605, 1
              %s610 = sphi %s560, %s560
              %s611 = sphi %s561, %s561
            $region246: #{tpu_custom_call.1} parent=235 // loop_header_branch
              %608 = sbr.rel (%p606) target = $region250
            $region247: #{tpu_custom_call.1} parent=235 // loop_body
              %v612 = vld [vmem:[%s610] sm:%s603]
              %613 = vst [vmem:[%s611] sm:%s603] %v612
              %v614 = vld [vmem:[%s610 + $0x8] sm:%s603]
              %615 = vst [vmem:[%s611 + $0x8] sm:%s603] %v614
              %v616 = vld [vmem:[%s610 + $0x10] sm:%s603]
              %617 = vst [vmem:[%s611 + $0x10] sm:%s603] %v616
              %v618 = vld [vmem:[%s610 + $0x18] sm:%s603]
              %619 = vst [vmem:[%s611 + $0x18] sm:%s603] %v618
              %v620 = vld [vmem:[%s610 + $0x20] sm:%s603]
              %621 = vst [vmem:[%s611 + $0x20] sm:%s603] %v620
              %v622 = vld [vmem:[%s610 + $0x28] sm:%s603]
              %623 = vst [vmem:[%s611 + $0x28] sm:%s603] %v622
              %v624 = vld [vmem:[%s610 + $0x30] sm:%s603]
              %625 = vst [vmem:[%s611 + $0x30] sm:%s603] %v624
              %v626 = vld [vmem:[%s610 + $0x38] sm:%s603]
              %627 = vst [vmem:[%s611 + $0x38] sm:%s603] %v626
            $region248: #{tpu_custom_call.1} parent=235 // loop_footer
              %s609 = sadd.s32 1, %s605
            $region249: #{tpu_custom_call.1} parent=235 // loop_footer_branch
              %604 = sbr.rel target = $region245
            $region250: #{tpu_custom_call.1} parent=235 // loop_exit
              _
          $region236: #{tpu_custom_call.1} parent=220 // pred_fallthru
            _
        $region221: #{tpu_custom_call.1} parent=27 // pred_fallthru
          _
        // Predicated region
        $region222: #{tpu_custom_call.1} parent=27 // pred_check
          _
        $region223: #{tpu_custom_call.1} parent=27 // pred_check_branch
          %565 = sbr.rel (0) target = $region225
        $region224: #{tpu_custom_call.1} parent=27 // pred_region
          %s567 = ssub.s32 2, 1
          loop: start=0, step=1, limit=1
          $region226: #{tpu_custom_call.1} parent=224 // loop_pre_header
            _
          $region227: #{tpu_custom_call.1} parent=224 // loop_header
            %s569 = sphi 0, %s573
            %p570 = scmp.ge.s32.totalorder %s569, 1
            %s574 = sphi %s560, %s560
            %s575 = sphi %s561, %s561
          $region228: #{tpu_custom_call.1} parent=224 // loop_header_branch
            %572 = sbr.rel (%p570) target = $region232
          $region229: #{tpu_custom_call.1} parent=224 // loop_body
            %v576 = vld [vmem:[%s574] sm:%s567]
            %577 = vst [vmem:[%s575] sm:%s567] %v576
            %v578 = vld [vmem:[%s574 + $0x8] sm:%s567]
            %579 = vst [vmem:[%s575 + $0x8] sm:%s567] %v578
            %v580 = vld [vmem:[%s574 + $0x10] sm:%s567]
            %581 = vst [vmem:[%s575 + $0x10] sm:%s567] %v580
            %v582 = vld [vmem:[%s574 + $0x18] sm:%s567]
            %583 = vst [vmem:[%s575 + $0x18] sm:%s567] %v582
            %v584 = vld [vmem:[%s574 + $0x20] sm:%s567]
            %585 = vst [vmem:[%s575 + $0x20] sm:%s567] %v584
            %v586 = vld [vmem:[%s574 + $0x28] sm:%s567]
            %587 = vst [vmem:[%s575 + $0x28] sm:%s567] %v586
            %v588 = vld [vmem:[%s574 + $0x30] sm:%s567]
            %589 = vst [vmem:[%s575 + $0x30] sm:%s567] %v588
            %v590 = vld [vmem:[%s574 + $0x38] sm:%s567]
            %591 = vst [vmem:[%s575 + $0x38] sm:%s567] %v590
          $region230: #{tpu_custom_call.1} parent=224 // loop_footer
            %s573 = sadd.s32 1, %s569
          $region231: #{tpu_custom_call.1} parent=224 // loop_footer_branch
            %568 = sbr.rel target = $region227
          $region232: #{tpu_custom_call.1} parent=224 // loop_exit
            _
        $region225: #{tpu_custom_call.1} parent=27 // pred_fallthru
          _
        // Predicated region
        $region251: #{tpu_custom_call.1} parent=27 // pred_check
          _
        $region252: #{tpu_custom_call.1} parent=27 // pred_check_branch
          %630 = sbr.rel (0) target = $region254
        $region253: #{tpu_custom_call.1} parent=27 // pred_region
          %631 = vsyncadd [#allocation3], 128
        $region254: #{tpu_custom_call.1} parent=27 // pred_fallthru
          _
        %s632 = sadd.s32 %s165, 6
        %s633 = sld [smem:[#allocation5 + %s632]]
        %s634 = sshrl.u32 %s633, 3
        %s635 = sand.u32 %s633, 7
        %s636 = smul.u32 %s634, 64
        %s637 = sadd.s32 %s635, %s636
        %s638 = scalar_lea.vmem [#allocation6], %s637
        %s639 = scalar_lea.vmem [#allocation2], 6
        // Predicated region
        $region255: #{tpu_custom_call.1} parent=27 // pred_check
          _
        $region256: #{tpu_custom_call.1} parent=27 // pred_check_branch
          %641 = sbr.rel target = $region258
        $region257: #{tpu_custom_call.1} parent=27 // pred_region
          // Predicated region
          $region270: #{tpu_custom_call.1} parent=257 // pred_check
            _
          $region271: #{tpu_custom_call.1} parent=257 // pred_check_branch
            %671 = sbr.rel (0) target = $region273
          $region272: #{tpu_custom_call.1} parent=257 // pred_region
            loop: start=0, step=1, limit=1
            $region274: #{tpu_custom_call.1} parent=272 // loop_pre_header
              _
            $region275: #{tpu_custom_call.1} parent=272 // loop_header
              %s673 = sphi 0, %s677
              %p674 = scmp.ge.s32.totalorder %s673, 1
              %s678 = sphi %s638, %s638
              %s679 = sphi %s639, %s639
            $region276: #{tpu_custom_call.1} parent=272 // loop_header_branch
              %676 = sbr.rel (%p674) target = $region280
            $region277: #{tpu_custom_call.1} parent=272 // loop_body
              _
            $region278: #{tpu_custom_call.1} parent=272 // loop_footer
              %s677 = sadd.s32 1, %s673
            $region279: #{tpu_custom_call.1} parent=272 // loop_footer_branch
              %672 = sbr.rel target = $region275
            $region280: #{tpu_custom_call.1} parent=272 // loop_exit
              _
            %s681 = ssub.s32 2, 1
            loop: start=0, step=1, limit=1
            $region281: #{tpu_custom_call.1} parent=272 // loop_pre_header
              _
            $region282: #{tpu_custom_call.1} parent=272 // loop_header
              %s683 = sphi 0, %s687
              %p684 = scmp.ge.s32.totalorder %s683, 1
              %s688 = sphi %s638, %s638
              %s689 = sphi %s639, %s639
            $region283: #{tpu_custom_call.1} parent=272 // loop_header_branch
              %686 = sbr.rel (%p684) target = $region287
            $region284: #{tpu_custom_call.1} parent=272 // loop_body
              %v690 = vld [vmem:[%s688] sm:%s681]
              %691 = vst [vmem:[%s689] sm:%s681] %v690
              %v692 = vld [vmem:[%s688 + $0x8] sm:%s681]
              %693 = vst [vmem:[%s689 + $0x8] sm:%s681] %v692
              %v694 = vld [vmem:[%s688 + $0x10] sm:%s681]
              %695 = vst [vmem:[%s689 + $0x10] sm:%s681] %v694
              %v696 = vld [vmem:[%s688 + $0x18] sm:%s681]
              %697 = vst [vmem:[%s689 + $0x18] sm:%s681] %v696
              %v698 = vld [vmem:[%s688 + $0x20] sm:%s681]
              %699 = vst [vmem:[%s689 + $0x20] sm:%s681] %v698
              %v700 = vld [vmem:[%s688 + $0x28] sm:%s681]
              %701 = vst [vmem:[%s689 + $0x28] sm:%s681] %v700
              %v702 = vld [vmem:[%s688 + $0x30] sm:%s681]
              %703 = vst [vmem:[%s689 + $0x30] sm:%s681] %v702
              %v704 = vld [vmem:[%s688 + $0x38] sm:%s681]
              %705 = vst [vmem:[%s689 + $0x38] sm:%s681] %v704
            $region285: #{tpu_custom_call.1} parent=272 // loop_footer
              %s687 = sadd.s32 1, %s683
            $region286: #{tpu_custom_call.1} parent=272 // loop_footer_branch
              %682 = sbr.rel target = $region282
            $region287: #{tpu_custom_call.1} parent=272 // loop_exit
              _
          $region273: #{tpu_custom_call.1} parent=257 // pred_fallthru
            _
        $region258: #{tpu_custom_call.1} parent=27 // pred_fallthru
          _
        // Predicated region
        $region259: #{tpu_custom_call.1} parent=27 // pred_check
          _
        $region260: #{tpu_custom_call.1} parent=27 // pred_check_branch
          %643 = sbr.rel (0) target = $region262
        $region261: #{tpu_custom_call.1} parent=27 // pred_region
          %s645 = ssub.s32 2, 1
          loop: start=0, step=1, limit=1
          $region263: #{tpu_custom_call.1} parent=261 // loop_pre_header
            _
          $region264: #{tpu_custom_call.1} parent=261 // loop_header
            %s647 = sphi 0, %s651
            %p648 = scmp.ge.s32.totalorder %s647, 1
            %s652 = sphi %s638, %s638
            %s653 = sphi %s639, %s639
          $region265: #{tpu_custom_call.1} parent=261 // loop_header_branch
            %650 = sbr.rel (%p648) target = $region269
          $region266: #{tpu_custom_call.1} parent=261 // loop_body
            %v654 = vld [vmem:[%s652] sm:%s645]
            %655 = vst [vmem:[%s653] sm:%s645] %v654
            %v656 = vld [vmem:[%s652 + $0x8] sm:%s645]
            %657 = vst [vmem:[%s653 + $0x8] sm:%s645] %v656
            %v658 = vld [vmem:[%s652 + $0x10] sm:%s645]
            %659 = vst [vmem:[%s653 + $0x10] sm:%s645] %v658
            %v660 = vld [vmem:[%s652 + $0x18] sm:%s645]
            %661 = vst [vmem:[%s653 + $0x18] sm:%s645] %v660
            %v662 = vld [vmem:[%s652 + $0x20] sm:%s645]
            %663 = vst [vmem:[%s653 + $0x20] sm:%s645] %v662
            %v664 = vld [vmem:[%s652 + $0x28] sm:%s645]
            %665 = vst [vmem:[%s653 + $0x28] sm:%s645] %v664
            %v666 = vld [vmem:[%s652 + $0x30] sm:%s645]
            %667 = vst [vmem:[%s653 + $0x30] sm:%s645] %v666
            %v668 = vld [vmem:[%s652 + $0x38] sm:%s645]
            %669 = vst [vmem:[%s653 + $0x38] sm:%s645] %v668
          $region267: #{tpu_custom_call.1} parent=261 // loop_footer
            %s651 = sadd.s32 1, %s647
          $region268: #{tpu_custom_call.1} parent=261 // loop_footer_branch
            %646 = sbr.rel target = $region264
          $region269: #{tpu_custom_call.1} parent=261 // loop_exit
            _
        $region262: #{tpu_custom_call.1} parent=27 // pred_fallthru
          _
        // Predicated region
        $region288: #{tpu_custom_call.1} parent=27 // pred_check
          _
        $region289: #{tpu_custom_call.1} parent=27 // pred_check_branch
          %708 = sbr.rel (0) target = $region291
        $region290: #{tpu_custom_call.1} parent=27 // pred_region
          %709 = vsyncadd [#allocation3], 128
        $region291: #{tpu_custom_call.1} parent=27 // pred_fallthru
          _
        %s710 = sadd.s32 %s165, 7
        %s711 = sld [smem:[#allocation5 + %s710]]
        %s712 = sshrl.u32 %s711, 3
        %s713 = sand.u32 %s711, 7
        %s714 = smul.u32 %s712, 64
        %s715 = sadd.s32 %s713, %s714
        %s716 = scalar_lea.vmem [#allocation6], %s715
        %s717 = scalar_lea.vmem [#allocation2], 7
        // Predicated region
        $region292: #{tpu_custom_call.1} parent=27 // pred_check
          _
        $region293: #{tpu_custom_call.1} parent=27 // pred_check_branch
          %719 = sbr.rel target = $region295
        $region294: #{tpu_custom_call.1} parent=27 // pred_region
          // Predicated region
          $region307: #{tpu_custom_call.1} parent=294 // pred_check
            _
          $region308: #{tpu_custom_call.1} parent=294 // pred_check_branch
            %749 = sbr.rel (0) target = $region310
          $region309: #{tpu_custom_call.1} parent=294 // pred_region
            loop: start=0, step=1, limit=1
            $region311: #{tpu_custom_call.1} parent=309 // loop_pre_header
              _
            $region312: #{tpu_custom_call.1} parent=309 // loop_header
              %s751 = sphi 0, %s755
              %p752 = scmp.ge.s32.totalorder %s751, 1
              %s756 = sphi %s716, %s716
              %s757 = sphi %s717, %s717
            $region313: #{tpu_custom_call.1} parent=309 // loop_header_branch
              %754 = sbr.rel (%p752) target = $region317
            $region314: #{tpu_custom_call.1} parent=309 // loop_body
              _
            $region315: #{tpu_custom_call.1} parent=309 // loop_footer
              %s755 = sadd.s32 1, %s751
            $region316: #{tpu_custom_call.1} parent=309 // loop_footer_branch
              %750 = sbr.rel target = $region312
            $region317: #{tpu_custom_call.1} parent=309 // loop_exit
              _
            %s759 = ssub.s32 2, 1
            loop: start=0, step=1, limit=1
            $region318: #{tpu_custom_call.1} parent=309 // loop_pre_header
              _
            $region319: #{tpu_custom_call.1} parent=309 // loop_header
              %s761 = sphi 0, %s765
              %p762 = scmp.ge.s32.totalorder %s761, 1
              %s766 = sphi %s716, %s716
              %s767 = sphi %s717, %s717
            $region320: #{tpu_custom_call.1} parent=309 // loop_header_branch
              %764 = sbr.rel (%p762) target = $region324
            $region321: #{tpu_custom_call.1} parent=309 // loop_body
              %v768 = vld [vmem:[%s766] sm:%s759]
              %769 = vst [vmem:[%s767] sm:%s759] %v768
              %v770 = vld [vmem:[%s766 + $0x8] sm:%s759]
              %771 = vst [vmem:[%s767 + $0x8] sm:%s759] %v770
              %v772 = vld [vmem:[%s766 + $0x10] sm:%s759]
              %773 = vst [vmem:[%s767 + $0x10] sm:%s759] %v772
              %v774 = vld [vmem:[%s766 + $0x18] sm:%s759]
              %775 = vst [vmem:[%s767 + $0x18] sm:%s759] %v774
              %v776 = vld [vmem:[%s766 + $0x20] sm:%s759]
              %777 = vst [vmem:[%s767 + $0x20] sm:%s759] %v776
              %v778 = vld [vmem:[%s766 + $0x28] sm:%s759]
              %779 = vst [vmem:[%s767 + $0x28] sm:%s759] %v778
              %v780 = vld [vmem:[%s766 + $0x30] sm:%s759]
              %781 = vst [vmem:[%s767 + $0x30] sm:%s759] %v780
              %v782 = vld [vmem:[%s766 + $0x38] sm:%s759]
              %783 = vst [vmem:[%s767 + $0x38] sm:%s759] %v782
            $region322: #{tpu_custom_call.1} parent=309 // loop_footer
              %s765 = sadd.s32 1, %s761
            $region323: #{tpu_custom_call.1} parent=309 // loop_footer_branch
              %760 = sbr.rel target = $region319
            $region324: #{tpu_custom_call.1} parent=309 // loop_exit
              _
          $region310: #{tpu_custom_call.1} parent=294 // pred_fallthru
            _
        $region295: #{tpu_custom_call.1} parent=27 // pred_fallthru
          _
        // Predicated region
        $region296: #{tpu_custom_call.1} parent=27 // pred_check
          _
        $region297: #{tpu_custom_call.1} parent=27 // pred_check_branch
          %721 = sbr.rel (0) target = $region299
        $region298: #{tpu_custom_call.1} parent=27 // pred_region
          %s723 = ssub.s32 2, 1
          loop: start=0, step=1, limit=1
          $region300: #{tpu_custom_call.1} parent=298 // loop_pre_header
            _
          $region301: #{tpu_custom_call.1} parent=298 // loop_header
            %s725 = sphi 0, %s729
            %p726 = scmp.ge.s32.totalorder %s725, 1
            %s730 = sphi %s716, %s716
            %s731 = sphi %s717, %s717
          $region302: #{tpu_custom_call.1} parent=298 // loop_header_branch
            %728 = sbr.rel (%p726) target = $region306
          $region303: #{tpu_custom_call.1} parent=298 // loop_body
            %v732 = vld [vmem:[%s730] sm:%s723]
            %733 = vst [vmem:[%s731] sm:%s723] %v732
            %v734 = vld [vmem:[%s730 + $0x8] sm:%s723]
            %735 = vst [vmem:[%s731 + $0x8] sm:%s723] %v734
            %v736 = vld [vmem:[%s730 + $0x10] sm:%s723]
            %737 = vst [vmem:[%s731 + $0x10] sm:%s723] %v736
            %v738 = vld [vmem:[%s730 + $0x18] sm:%s723]
            %739 = vst [vmem:[%s731 + $0x18] sm:%s723] %v738
            %v740 = vld [vmem:[%s730 + $0x20] sm:%s723]
            %741 = vst [vmem:[%s731 + $0x20] sm:%s723] %v740
            %v742 = vld [vmem:[%s730 + $0x28] sm:%s723]
            %743 = vst [vmem:[%s731 + $0x28] sm:%s723] %v742
            %v744 = vld [vmem:[%s730 + $0x30] sm:%s723]
            %745 = vst [vmem:[%s731 + $0x30] sm:%s723] %v744
            %v746 = vld [vmem:[%s730 + $0x38] sm:%s723]
            %747 = vst [vmem:[%s731 + $0x38] sm:%s723] %v746
          $region304: #{tpu_custom_call.1} parent=298 // loop_footer
            %s729 = sadd.s32 1, %s725
          $region305: #{tpu_custom_call.1} parent=298 // loop_footer_branch
            %724 = sbr.rel target = $region301
          $region306: #{tpu_custom_call.1} parent=298 // loop_exit
            _
        $region299: #{tpu_custom_call.1} parent=27 // pred_fallthru
          _
        // Predicated region
        $region325: #{tpu_custom_call.1} parent=27 // pred_check
          _
        $region326: #{tpu_custom_call.1} parent=27 // pred_check_branch
          %786 = sbr.rel (0) target = $region328
        $region327: #{tpu_custom_call.1} parent=27 // pred_region
          %787 = vsyncadd [#allocation3], 128
        $region328: #{tpu_custom_call.1} parent=27 // pred_fallthru
          _
        %s788 = sld [smem:[#allocation5 + %s165]]
        %s789 = smul.u32 1, 8
        %s790 = sshll.u32 %s789, 4
        %791 = dma.done [#allocation3], %s790
        %s792 = sld [smem:[#allocation5 + %s242]]
        %s793 = sshll.u32 %s789, 4
        %794 = dma.done [#allocation3], %s793
        %s795 = sld [smem:[#allocation5 + %s320]]
        %s796 = sshll.u32 %s789, 4
        %797 = dma.done [#allocation3], %s796
        %s798 = sld [smem:[#allocation5 + %s398]]
        %s799 = sshll.u32 %s789, 4
        %800 = dma.done [#allocation3], %s799
        %s801 = sld [smem:[#allocation5 + %s476]]
        %s802 = sshll.u32 %s789, 4
        %803 = dma.done [#allocation3], %s802
        %s804 = sld [smem:[#allocation5 + %s554]]
        %s805 = sshll.u32 %s789, 4
        %806 = dma.done [#allocation3], %s805
        %s807 = sld [smem:[#allocation5 + %s632]]
        %s808 = sshll.u32 %s789, 4
        %809 = dma.done [#allocation3], %s808
        %s810 = sld [smem:[#allocation5 + %s710]]
        %s811 = sshll.u32 %s789, 4
        %812 = dma.done [#allocation3], %s811
        %s813 = sshra.s32 %s165, 3
        %s814 = sand.u32 %s165, 7
        %s815 = smul.u32 %s813, 8
        %s816 = smul.addr %s815, 8
        %s817 = scalar_lea.vmem [#allocation6], %s816
        %v818 = vld [vmem:[%s817] sm:$0xff]
        %v819 = vld [vmem:[%s817 + $0x8] sm:$0xff]
        %v820 = vld [vmem:[%s817 + $0x10] sm:$0xff]
        %v821 = vld [vmem:[%s817 + $0x18] sm:$0xff]
        %v822 = vld [vmem:[%s817 + $0x20] sm:$0xff]
        %v823 = vld [vmem:[%s817 + $0x28] sm:$0xff]
        %v824 = vld [vmem:[%s817 + $0x30] sm:$0xff]
        %v825 = vld [vmem:[%s817 + $0x38] sm:$0xff]
        %v826 = vld [vmem:[#allocation2] sm:$0xff]
        %v827 = vld [vmem:[#allocation2 + $0x8] sm:$0xff]
        %v828 = vld [vmem:[#allocation2 + $0x10] sm:$0xff]
        %v829 = vld [vmem:[#allocation2 + $0x18] sm:$0xff]
        %v830 = vld [vmem:[#allocation2 + $0x20] sm:$0xff]
        %v831 = vld [vmem:[#allocation2 + $0x28] sm:$0xff]
        %v832 = vld [vmem:[#allocation2 + $0x30] sm:$0xff]
        %v833 = vld [vmem:[#allocation2 + $0x38] sm:$0xff]
        %v834 = vld [vmem:[%s164] sm:$0xff]
        %v835 = vsub.f32 %v826, %v818
        %v836 = vsub.f32 %v827, %v819
        %v837 = vsub.f32 %v828, %v820
        %v838 = vsub.f32 %v829, %v821
        %v839 = vsub.f32 %v830, %v822
        %v840 = vsub.f32 %v831, %v823
        %v841 = vsub.f32 %v832, %v824
        %v842 = vsub.f32 %v833, %v825
        %844 = vset.pattern.permute.xlu0 0
        %845 = vperm.xlu0 %844, %v834
        %v846 = vpop.permute.xlu0 %845
        %v848 = vmul.f32 %v846, %v835
        %v849 = vmul.f32 %v846, %v836
        %v850 = vmul.f32 %v846, %v837
        %v851 = vmul.f32 %v846, %v838
        %v852 = vmul.f32 %v846, %v839
        %v853 = vmul.f32 %v846, %v840
        %v854 = vmul.f32 %v846, %v841
        %v855 = vmul.f32 %v846, %v842
        %v856 = vadd.f32 %v818, %v848
        %v857 = vadd.f32 %v819, %v849
        %v858 = vadd.f32 %v820, %v850
        %v859 = vadd.f32 %v821, %v851
        %v860 = vadd.f32 %v822, %v852
        %v861 = vadd.f32 %v823, %v853
        %v862 = vadd.f32 %v824, %v854
        %v863 = vadd.f32 %v825, %v855
        %864 = vst [vmem:[%s160] sm:$0xff] %v856
        %865 = vst [vmem:[%s160 + $0x8] sm:$0xff] %v857
        %866 = vst [vmem:[%s160 + $0x10] sm:$0xff] %v858
        %867 = vst [vmem:[%s160 + $0x18] sm:$0xff] %v859
        %868 = vst [vmem:[%s160 + $0x20] sm:$0xff] %v860
        %869 = vst [vmem:[%s160 + $0x28] sm:$0xff] %v861
        %870 = vst [vmem:[%s160 + $0x30] sm:$0xff] %v862
        %871 = vst [vmem:[%s160 + $0x38] sm:$0xff] %v863
        %s872 = sand.u32 %s81, 1
        %s873 = scalar_lea.sflag [#allocation8], %s872
        %s874 = sand.u32 %s81, 1
        %s875 = smul.addr %s874, 64
        %s876 = scalar_lea.vmem [#allocation9], %s875
        // Predicated region
        $region329: #{tpu_custom_call.1} parent=27 // pred_check
          %p877 = pneg %p91
        $region330: #{tpu_custom_call.1} parent=27 // pred_check_branch
          %879 = sbr.rel (%p877) target = $region332
        $region331: #{tpu_custom_call.1} parent=27 // pred_region
          %881 = vsyncadd %s873, 0
          %s882 = smul.addr %s26, 8
          %s883 = smul.addr %s882, 8
          %s884 = scalar_lea.hbm %s3, %s883
          %s886 = sshll.u32 %s876, 4
          %s887 = int_to_ptr.vmem [resolvable:$true] %s886
          %s888 = sshll.u32 %s884, 4
          %s889 = int_to_ptr.hbm [resolvable:$true] %s888
          %891 = dma.vmem_to_hbm [thread:$0]  %s887, 1024, %s889, %s873
        $region332: #{tpu_custom_call.1} parent=27 // pred_fallthru
          _
      $region28: #{tpu_custom_call.1} parent=5 // pred_fallthru
        _
      %p892 = scmp.le.s32.totalorder 2, %s21
      // Predicated region
      $region333: #{tpu_custom_call.1} parent=5 // pred_check
        %p893 = pneg %p892
      $region334: #{tpu_custom_call.1} parent=5 // pred_check_branch
        %895 = sbr.rel (%p893) target = $region336
      $region335: #{tpu_custom_call.1} parent=5 // pred_region
        %s896 = ssub.s32 %s21, 2
        // Predicated region
        $region337: #{tpu_custom_call.1} parent=335 // pred_check
          %p897 = pneg %p97
        $region338: #{tpu_custom_call.1} parent=335 // pred_check_branch
          %899 = sbr.rel (%p897) target = $region340
        $region339: #{tpu_custom_call.1} parent=335 // pred_region
          %s900 = sand.u32 %s82, 1
          %s901 = scalar_lea.sflag [#allocation8], %s900
          %s902 = sand.u32 %s82, 1
          %s903 = smul.addr %s902, 64
          %s904 = scalar_lea.vmem [#allocation9], %s903
          %906 = dma.done %s901, 1024
        $region340: #{tpu_custom_call.1} parent=335 // pred_fallthru
          _
      $region336: #{tpu_custom_call.1} parent=5 // pred_fallthru
        _
    $region6: #{tpu_custom_call.1} parent=1 // loop_footer
      %s25 = sadd.s32 1, %s21
    $region7: #{tpu_custom_call.1} parent=1 // loop_footer_branch
      %20 = sbr.rel target = $region3
    $region8: #{tpu_custom_call.1} parent=1 // loop_exit
      _
    %907 = vsyncpa [#allocation7], 1
    %s908 = scalar_lea.sflag [#allocation7], 1
    %909 = vsyncpa %s908, 1
    %910 = vsyncpa [#allocation8], 1
    %s911 = scalar_lea.sflag [#allocation8], 1
    %912 = vsyncpa %s911, 1
  %913 = vsyncmov [#allocation3]
  %s914 = vpop.sfrf %913
  %p915 = scmp.eq.s32.totalorder %s914, 0
  %p916 = pneg %p915
  %918 = shalt.err (%p916)

</llo_original>
